<compile_context>
chip_gen: v6e
topology: v6e:2x2x1
jax: 0.10.0
libtpu: 0.0.40
codegen_flags: <defaults>
</compile_context>

<pallas_src>
import numpy as np
import jax
import jax.numpy as jnp
from jax.experimental import pallas as pl
from jax.experimental.pallas import tpu as pltpu

# static hyper-parameters of the module
K1, C1 = 4, 3      # first Conv1d: kernel 4, out channels 3
K2, C2 = 4, 5      # second Conv1d: kernel 4, out channels 5
P = 3              # MaxPool1d kernel = stride = 3


def conv1d_text_kernel(x_ref, w1_ref, b1_ref, w2_ref, b2_ref, wd_ref, bd_ref,
                       out_ref, xt_ref, p1_ref):
    # x_ref : (Bt, L)            f32 VMEM  batch tile straight from HBM
    # w1_ref: (C1*K1,)           f32 SMEM  w1_flat[c*K1 + k]
    # b1_ref: (C1,)              f32 SMEM
    # w2_ref: (C2*C1*K2,)        f32 SMEM  w2_flat[(c*C1 + ci)*K2 + k]
    # b2_ref: (C2,)              f32 SMEM
    # wd_ref: (n_classes*C2,)    f32 SMEM  wd_flat[o*C2 + c]
    # bd_ref: (n_classes,)       f32 SMEM
    # out_ref: (n_classes, Bt)   f32 VMEM  classes on sublanes, batch on lanes
    # xt_ref : (L, Bt)           f32 VMEM scratch (time-major relayout of x)
    # p1_ref : (C1*L2, Bt)       f32 VMEM scratch (conv1+pool1 output, flat over channel)
    Bt, L = x_ref.shape
    L2 = (L - (K1 - 1)) // P            # conv1 -> pool1 output length
    L4 = (L2 - (K2 - 1)) // P           # conv2 -> pool2 output length
    n_classes = out_ref.shape[0]

    # ---- in-kernel relayout: (Bt, L) -> (L, Bt), time on sublanes, batch on lanes ----
    # XLU transpose; overlaps the VALU-bound conv work (no extra HBM pass).
    xt_ref[...] = jnp.transpose(x_ref[...], (1, 0))

    # ---- stage 1: Conv1d(1, C1, K1) fused with MaxPool1d(P) ----
    # p1[c, t, :] = b1[c] + max_{j<P} sum_k w1[c,k] * x[P*t + j + k, :]
    # Weights hoisted (j-invariant scalars); each tap slab is loaded inside the
    # (j, k) loop and dropped right after use to keep the live vreg set small.
    w1s = [[w1_ref[c * K1 + k] for k in range(K1)] for c in range(C1)]
    b1s = [b1_ref[c] for c in range(C1)]
    best1 = [None] * C1
    for j in range(P):
        acc = [None] * C1
        for k in range(K1):
            x_m = xt_ref[pl.ds(j + k, L2, P), :]                 # (L2, Bt)
            for c in range(C1):
                t = w1s[c][k] * x_m
                acc[c] = t if acc[c] is None else acc[c] + t
        for c in range(C1):
            best1[c] = acc[c] if best1[c] is None else jnp.maximum(best1[c], acc[c])
    for c in range(C1):
        p1_ref[pl.ds(c * L2, L2), :] = best1[c] + b1s[c]         # dense (L2, Bt) store

    # ---- stage 2: Conv1d(C1, C2, K2) fused with MaxPool1d(P) ----
    w2s = [[[w2_ref[(c * C1 + ci) * K2 + k] for k in range(K2)]
            for ci in range(C1)] for c in range(C2)]
    b2s = [b2_ref[c] for c in range(C2)]
    best2 = [None] * C2
    for j in range(P):
        acc = [None] * C2
        for k in range(K2):
            for ci in range(C1):
                p_m = p1_ref[pl.ds(ci * L2 + j + k, L4, P), :]   # (L4, Bt)
                for c in range(C2):
                    t = w2s[c][ci][k] * p_m
                    acc[c] = t if acc[c] is None else acc[c] + t
        for c in range(C2):
            best2[c] = acc[c] if best2[c] is None else jnp.maximum(best2[c], acc[c])
    p2 = [best2[c] + b2s[c] for c in range(C2)]                  # (L4, Bt) each

    # ---- global mean over time, decoder, softmax (all lane-parallel in batch) ----
    inv_len = 1.0 / float(L4)
    pooled = [jnp.sum(p2[c], axis=0, keepdims=True) * inv_len for c in range(C2)]  # (1, Bt)

    logits = []
    for o in range(n_classes):
        z = bd_ref[o] + wd_ref[o * C2] * pooled[0]
        for c in range(1, C2):
            z = z + wd_ref[o * C2 + c] * pooled[c]
        logits.append(z)                                         # (1, Bt)

    m = logits[0]
    for o in range(1, n_classes):
        m = jnp.maximum(m, logits[o])
    exps = [jnp.exp(logits[o] - m) for o in range(n_classes)]
    denom = exps[0]
    for o in range(1, n_classes):
        denom = denom + exps[o]
    inv_denom = 1.0 / denom
    probs = [exps[o] * inv_denom for o in range(n_classes)]      # (1, Bt) each
    out_ref[...] = jnp.concatenate(probs, axis=0).astype(out_ref.dtype)


def conv1d_text_forward(x, params, *, batch_tile=512):
    """x: (B, 1, L) float32 (PyTorch NCW). Returns softmax probas (B, n_classes)."""
    w1, b1, w2, b2, wd, bd = params
    B, cin, L = x.shape
    assert cin == 1
    n_classes, nf = wd.shape
    assert nf == C2
    L2 = (L - (K1 - 1)) // P
    L4 = (L2 - (K2 - 1)) // P
    # short-sequence guard: the conv/pool stack needs at least one output step
    assert L4 >= 1, f"max_length={L} too short for Conv1d/MaxPool stack (L4={L4})"

    # ---- batch-tile selection (lane axis) ----
    # Keep the per-tile working set (double-buffered x block, xt / p1 scratch,
    # live conv temps, output block) well under a 32 MiB VMEM budget, which is
    # safe on v5e/v6e (128 MiB) and v7x (64 MiB / TC).
    batch_tile = max(128, (int(batch_tile) // 128) * 128)
    per_lane_bytes = 4 * (3 * L + (C1 + 8) * L2 + 12 * L4 + 2 * n_classes)
    bt_cap = max(128, ((18 * 1024 * 1024) // per_lane_bytes) // 128 * 128)
    tile = min(batch_tile, bt_cap)

    if B <= tile:
        Bt, B_pad = B, B            # single tile: full-array block satisfies the (8,128) rule
    else:
        Bt = tile                   # multiple of 128 -> >= 2 tiles, megacore can split them
        B_pad = -(-B // Bt) * Bt

    # glue (no HBM transpose pass): (B,1,L) -> (B,L) + optional batch pad; flat SMEM params
    x2d = x[:, 0, :].astype(jnp.float32)                              # (B, L)
    if B_pad != B:
        x2d = jnp.pad(x2d, ((0, B_pad - B), (0, 0)))
    w1_f = w1.reshape(C1 * K1).astype(jnp.float32)                    # [c*K1 + k]
    b1_f = b1.reshape(C1).astype(jnp.float32)
    w2_f = w2.reshape(C2 * C1 * K2).astype(jnp.float32)               # [(c*C1+ci)*K2+k]
    b2_f = b2.reshape(C2).astype(jnp.float32)
    wd_f = wd.reshape(n_classes * C2).astype(jnp.float32)             # [o*C2 + c]
    bd_f = bd.reshape(n_classes).astype(jnp.float32)

    smem = pl.BlockSpec(memory_space=pltpu.MemorySpace.SMEM)
    out = pl.pallas_call(
        conv1d_text_kernel,
        out_shape=jax.ShapeDtypeStruct((n_classes, B_pad), jnp.float32),
        grid=(B_pad // Bt,),
        in_specs=[pl.BlockSpec((Bt, L), lambda i: (i, 0)),            # x tile, pipelined
                  smem, smem, smem, smem, smem, smem],                # tiny params
        out_specs=pl.BlockSpec((n_classes, Bt), lambda i: (0, i)),    # lane-dense output
        scratch_shapes=[pltpu.VMEM((L, Bt), jnp.float32),             # xt (time-major x)
                        pltpu.VMEM((C1 * L2, Bt), jnp.float32)],      # p1 (conv1+pool1)
        compiler_params=pltpu.CompilerParams(
            dimension_semantics=("parallel",),                        # megacore on v7x
            vmem_limit_bytes=32 * 1024 * 1024),
    )(x2d, w1_f, b1_f, w2_f, b2_f, wd_f, bd_f)                        # (n_classes, B_pad)

    return jnp.transpose(out[:, :B], (1, 0))                          # (B, n_classes)


# ------------------------- pure-JAX reference -------------------------
def _conv1d_ref(x, w, b):
    B, cin, L = x.shape
    cout, _, K = w.shape
    Lout = L - K + 1
    out = jnp.zeros((B, cout, Lout), jnp.float32) + b[None, :, None]
    for k in range(K):
        out = out + jnp.einsum('bcl,oc->bol', x[:, :, k:k + Lout], w[:, :, k])
    return out


def _maxpool1d_ref(x, k):
    B, C, L = x.shape
    Lout = L // k
    return x[:, :, :Lout * k].reshape(B, C, Lout, k).max(axis=-1)


def reference_forward(x, params):
    w1, b1, w2, b2, wd, bd = params
    h = _conv1d_ref(x, w1, b1)
    h = _maxpool1d_ref(h, P)
    h = _conv1d_ref(h, w2, b2)
    h = _maxpool1d_ref(h, P)
    pooled = jnp.mean(h, axis=-1)
    decoded = pooled @ wd.T + bd
    return jax.nn.softmax(decoded, axis=-1)


if __name__ == "__main__":
    # small, forward-consistent shapes: n_features must equal 5 (channels after conv stack)
    batch, max_length, n_features, n_classes = 2, 40, 5, 4
    assert n_features == C2

    key = jax.random.PRNGKey(0)
    ks = jax.random.split(key, 7)
    w1 = jax.random.normal(ks[0], (C1, 1, K1), jnp.float32) * 0.3
    b1 = jax.random.normal(ks[1], (C1,), jnp.float32) * 0.1
    w2 = jax.random.normal(ks[2], (C2, C1, K2), jnp.float32) * 0.3
    b2 = jax.random.normal(ks[3], (C2,), jnp.float32) * 0.1
    wd = jax.random.normal(ks[4], (n_classes, n_features), jnp.float32) * 0.3
    bd = jax.random.normal(ks[5], (n_classes,), jnp.float32) * 0.1
    x = jax.random.normal(ks[6], (batch, 1, max_length), jnp.float32)

    params = (w1, b1, w2, b2, wd, bd)

    out = conv1d_text_forward(x, params)
    out = jax.block_until_ready(out)

    ref = reference_forward(x, params)
    np.testing.assert_allclose(np.asarray(out), np.asarray(ref), rtol=1e-4, atol=1e-5)

    print("KERNEL_OK")
</pallas_src>

<mosaic_0001>
module attributes {stable_mosaic.version = 11 : i64} {
  func.func @conv1d_text_kernel(%arg0: i32, %arg1: memref<2x40xf32, #tpu.memory_space<vmem>>, %arg2: memref<12xf32, #tpu.memory_space<smem>>, %arg3: memref<3xf32, #tpu.memory_space<smem>>, %arg4: memref<60xf32, #tpu.memory_space<smem>>, %arg5: memref<5xf32, #tpu.memory_space<smem>>, %arg6: memref<20xf32, #tpu.memory_space<smem>>, %arg7: memref<4xf32, #tpu.memory_space<smem>>, %arg8: memref<4x2xf32, #tpu.memory_space<vmem>>, %arg9: memref<40x2xf32, #tpu.memory_space<vmem>>, %arg10: memref<36x2xf32, #tpu.memory_space<vmem>>) attributes {dimension_semantics = [#tpu.dimension_semantics<parallel>], iteration_bounds = array<i64: 1>, scalar_prefetch = 0 : i64, scratch_operands = 2 : i64, tpu.core_type = #tpu.core_type<tc>, window_params = [{transform_indices = @transform_0, window_bounds = array<i64: 2, 40>}, {transform_indices = @transform_1, window_bounds = array<i64: 12>}, {transform_indices = @transform_2, window_bounds = array<i64: 3>}, {transform_indices = @transform_3, window_bounds = array<i64: 60>}, {transform_indices = @transform_4, window_bounds = array<i64: 5>}, {transform_indices = @transform_5, window_bounds = array<i64: 20>}, {transform_indices = @transform_6, window_bounds = array<i64: 4>}, {transform_indices = @transform_7, window_bounds = array<i64: 4, 2>}]} {
    %c0 = arith.constant 0 : index
    %c0_0 = arith.constant 0 : index
    %0 = vector.load %arg1[%c0, %c0_0] : memref<2x40xf32, #tpu.memory_space<vmem>>, vector<2x40xf32>
    %1 = tpu.transpose %0, [1, 0] : vector<2x40xf32> -> vector<40x2xf32>
    %c0_1 = arith.constant 0 : index
    %c0_2 = arith.constant 0 : index
    %2 = vector.load %arg9[%c0_1, %c0_2] : memref<40x2xf32, #tpu.memory_space<vmem>>, vector<40x2xf32>
    tpu.vector_store %arg9[%c0_1, %c0_2], %1 {strides = array<i32>} : memref<40x2xf32, #tpu.memory_space<vmem>>, vector<40x2xf32>,
    %c0_3 = arith.constant 0 : index
    %3 = memref.load %arg2[%c0_3] : memref<12xf32, #tpu.memory_space<smem>>
    %c1 = arith.constant 1 : index
    %4 = memref.load %arg2[%c1] : memref<12xf32, #tpu.memory_space<smem>>
    %c2 = arith.constant 2 : index
    %5 = memref.load %arg2[%c2] : memref<12xf32, #tpu.memory_space<smem>>
    %c3 = arith.constant 3 : index
    %6 = memref.load %arg2[%c3] : memref<12xf32, #tpu.memory_space<smem>>
    %c4 = arith.constant 4 : index
    %7 = memref.load %arg2[%c4] : memref<12xf32, #tpu.memory_space<smem>>
    %c5 = arith.constant 5 : index
    %8 = memref.load %arg2[%c5] : memref<12xf32, #tpu.memory_space<smem>>
    %c6 = arith.constant 6 : index
    %9 = memref.load %arg2[%c6] : memref<12xf32, #tpu.memory_space<smem>>
    %c7 = arith.constant 7 : index
    %10 = memref.load %arg2[%c7] : memref<12xf32, #tpu.memory_space<smem>>
    %c8 = arith.constant 8 : index
    %11 = memref.load %arg2[%c8] : memref<12xf32, #tpu.memory_space<smem>>
    %c9 = arith.constant 9 : index
    %12 = memref.load %arg2[%c9] : memref<12xf32, #tpu.memory_space<smem>>
    %c10 = arith.constant 10 : index
    %13 = memref.load %arg2[%c10] : memref<12xf32, #tpu.memory_space<smem>>
    %c11 = arith.constant 11 : index
    %14 = memref.load %arg2[%c11] : memref<12xf32, #tpu.memory_space<smem>>
    %c0_4 = arith.constant 0 : index
    %15 = memref.load %arg3[%c0_4] : memref<3xf32, #tpu.memory_space<smem>>
    %c1_5 = arith.constant 1 : index
    %16 = memref.load %arg3[%c1_5] : memref<3xf32, #tpu.memory_space<smem>>
    %c2_6 = arith.constant 2 : index
    %17 = memref.load %arg3[%c2_6] : memref<3xf32, #tpu.memory_space<smem>>
    %c0_7 = arith.constant 0 : index
    %c0_8 = arith.constant 0 : index
    %18 = tpu.strided_load %arg9[%c0_7, %c0_8] {strides = array<i32: 3, 1>} : memref<40x2xf32, #tpu.memory_space<vmem>>, vector<12x2xf32>
    %19 = vector.broadcast %3 : f32 to vector<12x2xf32>
    %20 = arith.mulf %19, %18 : vector<12x2xf32>
    %21 = vector.broadcast %7 : f32 to vector<12x2xf32>
    %22 = arith.mulf %21, %18 : vector<12x2xf32>
    %23 = vector.broadcast %11 : f32 to vector<12x2xf32>
    %24 = arith.mulf %23, %18 : vector<12x2xf32>
    %c1_9 = arith.constant 1 : index
    %c0_10 = arith.constant 0 : index
    %25 = tpu.strided_load %arg9[%c1_9, %c0_10] {strides = array<i32: 3, 1>} : memref<40x2xf32, #tpu.memory_space<vmem>>, vector<12x2xf32>
    %26 = vector.broadcast %4 : f32 to vector<12x2xf32>
    %27 = arith.mulf %26, %25 : vector<12x2xf32>
    %28 = arith.addf %20, %27 : vector<12x2xf32>
    %29 = vector.broadcast %8 : f32 to vector<12x2xf32>
    %30 = arith.mulf %29, %25 : vector<12x2xf32>
    %31 = arith.addf %22, %30 : vector<12x2xf32>
    %32 = vector.broadcast %12 : f32 to vector<12x2xf32>
    %33 = arith.mulf %32, %25 : vector<12x2xf32>
    %34 = arith.addf %24, %33 : vector<12x2xf32>
    %c2_11 = arith.constant 2 : index
    %c0_12 = arith.constant 0 : index
    %35 = tpu.strided_load %arg9[%c2_11, %c0_12] {strides = array<i32: 3, 1>} : memref<40x2xf32, #tpu.memory_space<vmem>>, vector<12x2xf32>
    %36 = vector.broadcast %5 : f32 to vector<12x2xf32>
    %37 = arith.mulf %36, %35 : vector<12x2xf32>
    %38 = arith.addf %28, %37 : vector<12x2xf32>
    %39 = vector.broadcast %9 : f32 to vector<12x2xf32>
    %40 = arith.mulf %39, %35 : vector<12x2xf32>
    %41 = arith.addf %31, %40 : vector<12x2xf32>
    %42 = vector.broadcast %13 : f32 to vector<12x2xf32>
    %43 = arith.mulf %42, %35 : vector<12x2xf32>
    %44 = arith.addf %34, %43 : vector<12x2xf32>
    %c3_13 = arith.constant 3 : index
    %c0_14 = arith.constant 0 : index
    %45 = tpu.strided_load %arg9[%c3_13, %c0_14] {strides = array<i32: 3, 1>} : memref<40x2xf32, #tpu.memory_space<vmem>>, vector<12x2xf32>
    %46 = vector.broadcast %6 : f32 to vector<12x2xf32>
    %47 = arith.mulf %46, %45 : vector<12x2xf32>
    %48 = arith.addf %38, %47 : vector<12x2xf32>
    %49 = vector.broadcast %10 : f32 to vector<12x2xf32>
    %50 = arith.mulf %49, %45 : vector<12x2xf32>
    %51 = arith.addf %41, %50 : vector<12x2xf32>
    %52 = vector.broadcast %14 : f32 to vector<12x2xf32>
    %53 = arith.mulf %52, %45 : vector<12x2xf32>
    %54 = arith.addf %44, %53 : vector<12x2xf32>
    %c1_15 = arith.constant 1 : index
    %c0_16 = arith.constant 0 : index
    %55 = tpu.strided_load %arg9[%c1_15, %c0_16] {strides = array<i32: 3, 1>} : memref<40x2xf32, #tpu.memory_space<vmem>>, vector<12x2xf32>
    %56 = vector.broadcast %3 : f32 to vector<12x2xf32>
    %57 = arith.mulf %56, %55 : vector<12x2xf32>
    %58 = vector.broadcast %7 : f32 to vector<12x2xf32>
    %59 = arith.mulf %58, %55 : vector<12x2xf32>
    %60 = vector.broadcast %11 : f32 to vector<12x2xf32>
    %61 = arith.mulf %60, %55 : vector<12x2xf32>
    %c2_17 = arith.constant 2 : index
    %c0_18 = arith.constant 0 : index
    %62 = tpu.strided_load %arg9[%c2_17, %c0_18] {strides = array<i32: 3, 1>} : memref<40x2xf32, #tpu.memory_space<vmem>>, vector<12x2xf32>
    %63 = vector.broadcast %4 : f32 to vector<12x2xf32>
    %64 = arith.mulf %63, %62 : vector<12x2xf32>
    %65 = arith.addf %57, %64 : vector<12x2xf32>
    %66 = vector.broadcast %8 : f32 to vector<12x2xf32>
    %67 = arith.mulf %66, %62 : vector<12x2xf32>
    %68 = arith.addf %59, %67 : vector<12x2xf32>
    %69 = vector.broadcast %12 : f32 to vector<12x2xf32>
    %70 = arith.mulf %69, %62 : vector<12x2xf32>
    %71 = arith.addf %61, %70 : vector<12x2xf32>
    %c3_19 = arith.constant 3 : index
    %c0_20 = arith.constant 0 : index
    %72 = tpu.strided_load %arg9[%c3_19, %c0_20] {strides = array<i32: 3, 1>} : memref<40x2xf32, #tpu.memory_space<vmem>>, vector<12x2xf32>
    %73 = vector.broadcast %5 : f32 to vector<12x2xf32>
    %74 = arith.mulf %73, %72 : vector<12x2xf32>
    %75 = arith.addf %65, %74 : vector<12x2xf32>
    %76 = vector.broadcast %9 : f32 to vector<12x2xf32>
    %77 = arith.mulf %76, %72 : vector<12x2xf32>
    %78 = arith.addf %68, %77 : vector<12x2xf32>
    %79 = vector.broadcast %13 : f32 to vector<12x2xf32>
    %80 = arith.mulf %79, %72 : vector<12x2xf32>
    %81 = arith.addf %71, %80 : vector<12x2xf32>
    %c4_21 = arith.constant 4 : index
    %c0_22 = arith.constant 0 : index
    %82 = tpu.strided_load %arg9[%c4_21, %c0_22] {strides = array<i32: 3, 1>} : memref<40x2xf32, #tpu.memory_space<vmem>>, vector<12x2xf32>
    %83 = vector.broadcast %6 : f32 to vector<12x2xf32>
    %84 = arith.mulf %83, %82 : vector<12x2xf32>
    %85 = arith.addf %75, %84 : vector<12x2xf32>
    %86 = vector.broadcast %10 : f32 to vector<12x2xf32>
    %87 = arith.mulf %86, %82 : vector<12x2xf32>
    %88 = arith.addf %78, %87 : vector<12x2xf32>
    %89 = vector.broadcast %14 : f32 to vector<12x2xf32>
    %90 = arith.mulf %89, %82 : vector<12x2xf32>
    %91 = arith.addf %81, %90 : vector<12x2xf32>
    %92 = arith.maximumf %48, %85 : vector<12x2xf32>
    %93 = arith.maximumf %51, %88 : vector<12x2xf32>
    %94 = arith.maximumf %54, %91 : vector<12x2xf32>
    %c2_23 = arith.constant 2 : index
    %c0_24 = arith.constant 0 : index
    %95 = tpu.strided_load %arg9[%c2_23, %c0_24] {strides = array<i32: 3, 1>} : memref<40x2xf32, #tpu.memory_space<vmem>>, vector<12x2xf32>
    %96 = vector.broadcast %3 : f32 to vector<12x2xf32>
    %97 = arith.mulf %96, %95 : vector<12x2xf32>
    %98 = vector.broadcast %7 : f32 to vector<12x2xf32>
    %99 = arith.mulf %98, %95 : vector<12x2xf32>
    %100 = vector.broadcast %11 : f32 to vector<12x2xf32>
    %101 = arith.mulf %100, %95 : vector<12x2xf32>
    %c3_25 = arith.constant 3 : index
    %c0_26 = arith.constant 0 : index
    %102 = tpu.strided_load %arg9[%c3_25, %c0_26] {strides = array<i32: 3, 1>} : memref<40x2xf32, #tpu.memory_space<vmem>>, vector<12x2xf32>
    %103 = vector.broadcast %4 : f32 to vector<12x2xf32>
    %104 = arith.mulf %103, %102 : vector<12x2xf32>
    %105 = arith.addf %97, %104 : vector<12x2xf32>
    %106 = vector.broadcast %8 : f32 to vector<12x2xf32>
    %107 = arith.mulf %106, %102 : vector<12x2xf32>
    %108 = arith.addf %99, %107 : vector<12x2xf32>
    %109 = vector.broadcast %12 : f32 to vector<12x2xf32>
    %110 = arith.mulf %109, %102 : vector<12x2xf32>
    %111 = arith.addf %101, %110 : vector<12x2xf32>
    %c4_27 = arith.constant 4 : index
    %c0_28 = arith.constant 0 : index
    %112 = tpu.strided_load %arg9[%c4_27, %c0_28] {strides = array<i32: 3, 1>} : memref<40x2xf32, #tpu.memory_space<vmem>>, vector<12x2xf32>
    %113 = vector.broadcast %5 : f32 to vector<12x2xf32>
    %114 = arith.mulf %113, %112 : vector<12x2xf32>
    %115 = arith.addf %105, %114 : vector<12x2xf32>
    %116 = vector.broadcast %9 : f32 to vector<12x2xf32>
    %117 = arith.mulf %116, %112 : vector<12x2xf32>
    %118 = arith.addf %108, %117 : vector<12x2xf32>
    %119 = vector.broadcast %13 : f32 to vector<12x2xf32>
    %120 = arith.mulf %119, %112 : vector<12x2xf32>
    %121 = arith.addf %111, %120 : vector<12x2xf32>
    %c5_29 = arith.constant 5 : index
    %c0_30 = arith.constant 0 : index
    %122 = tpu.strided_load %arg9[%c5_29, %c0_30] {strides = array<i32: 3, 1>} : memref<40x2xf32, #tpu.memory_space<vmem>>, vector<12x2xf32>
    %123 = vector.broadcast %6 : f32 to vector<12x2xf32>
    %124 = arith.mulf %123, %122 : vector<12x2xf32>
    %125 = arith.addf %115, %124 : vector<12x2xf32>
    %126 = vector.broadcast %10 : f32 to vector<12x2xf32>
    %127 = arith.mulf %126, %122 : vector<12x2xf32>
    %128 = arith.addf %118, %127 : vector<12x2xf32>
    %129 = vector.broadcast %14 : f32 to vector<12x2xf32>
    %130 = arith.mulf %129, %122 : vector<12x2xf32>
    %131 = arith.addf %121, %130 : vector<12x2xf32>
    %132 = arith.maximumf %92, %125 : vector<12x2xf32>
    %133 = arith.maximumf %93, %128 : vector<12x2xf32>
    %134 = arith.maximumf %94, %131 : vector<12x2xf32>
    %135 = vector.broadcast %15 : f32 to vector<12x2xf32>
    %136 = arith.addf %132, %135 : vector<12x2xf32>
    %c0_31 = arith.constant 0 : index
    %c0_32 = arith.constant 0 : index
    %137 = vector.load %arg10[%c0_31, %c0_32] : memref<36x2xf32, #tpu.memory_space<vmem>>, vector<12x2xf32>
    tpu.vector_store %arg10[%c0_31, %c0_32], %136 {strides = array<i32>} : memref<36x2xf32, #tpu.memory_space<vmem>>, vector<12x2xf32>,
    %138 = vector.broadcast %16 : f32 to vector<12x2xf32>
    %139 = arith.addf %133, %138 : vector<12x2xf32>
    %c12 = arith.constant 12 : index
    %c0_33 = arith.constant 0 : index
    %140 = vector.load %arg10[%c12, %c0_33] : memref<36x2xf32, #tpu.memory_space<vmem>>, vector<12x2xf32>
    tpu.vector_store %arg10[%c12, %c0_33], %139 {strides = array<i32>} : memref<36x2xf32, #tpu.memory_space<vmem>>, vector<12x2xf32>,
    %141 = vector.broadcast %17 : f32 to vector<12x2xf32>
    %142 = arith.addf %134, %141 : vector<12x2xf32>
    %c24 = arith.constant 24 : index
    %c0_34 = arith.constant 0 : index
    %143 = vector.load %arg10[%c24, %c0_34] : memref<36x2xf32, #tpu.memory_space<vmem>>, vector<12x2xf32>
    tpu.vector_store %arg10[%c24, %c0_34], %142 {strides = array<i32>} : memref<36x2xf32, #tpu.memory_space<vmem>>, vector<12x2xf32>,
    %c0_35 = arith.constant 0 : index
    %144 = memref.load %arg4[%c0_35] : memref<60xf32, #tpu.memory_space<smem>>
    %c1_36 = arith.constant 1 : index
    %145 = memref.load %arg4[%c1_36] : memref<60xf32, #tpu.memory_space<smem>>
    %c2_37 = arith.constant 2 : index
    %146 = memref.load %arg4[%c2_37] : memref<60xf32, #tpu.memory_space<smem>>
    %c3_38 = arith.constant 3 : index
    %147 = memref.load %arg4[%c3_38] : memref<60xf32, #tpu.memory_space<smem>>
    %c4_39 = arith.constant 4 : index
    %148 = memref.load %arg4[%c4_39] : memref<60xf32, #tpu.memory_space<smem>>
    %c5_40 = arith.constant 5 : index
    %149 = memref.load %arg4[%c5_40] : memref<60xf32, #tpu.memory_space<smem>>
    %c6_41 = arith.constant 6 : index
    %150 = memref.load %arg4[%c6_41] : memref<60xf32, #tpu.memory_space<smem>>
    %c7_42 = arith.constant 7 : index
    %151 = memref.load %arg4[%c7_42] : memref<60xf32, #tpu.memory_space<smem>>
    %c8_43 = arith.constant 8 : index
    %152 = memref.load %arg4[%c8_43] : memref<60xf32, #tpu.memory_space<smem>>
    %c9_44 = arith.constant 9 : index
    %153 = memref.load %arg4[%c9_44] : memref<60xf32, #tpu.memory_space<smem>>
    %c10_45 = arith.constant 10 : index
    %154 = memref.load %arg4[%c10_45] : memref<60xf32, #tpu.memory_space<smem>>
    %c11_46 = arith.constant 11 : index
    %155 = memref.load %arg4[%c11_46] : memref<60xf32, #tpu.memory_space<smem>>
    %c12_47 = arith.constant 12 : index
    %156 = memref.load %arg4[%c12_47] : memref<60xf32, #tpu.memory_space<smem>>
    %c13 = arith.constant 13 : index
    %157 = memref.load %arg4[%c13] : memref<60xf32, #tpu.memory_space<smem>>
    %c14 = arith.constant 14 : index
    %158 = memref.load %arg4[%c14] : memref<60xf32, #tpu.memory_space<smem>>
    %c15 = arith.constant 15 : index
    %159 = memref.load %arg4[%c15] : memref<60xf32, #tpu.memory_space<smem>>
    %c16 = arith.constant 16 : index
    %160 = memref.load %arg4[%c16] : memref<60xf32, #tpu.memory_space<smem>>
    %c17 = arith.constant 17 : index
    %161 = memref.load %arg4[%c17] : memref<60xf32, #tpu.memory_space<smem>>
    %c18 = arith.constant 18 : index
    %162 = memref.load %arg4[%c18] : memref<60xf32, #tpu.memory_space<smem>>
    %c19 = arith.constant 19 : index
    %163 = memref.load %arg4[%c19] : memref<60xf32, #tpu.memory_space<smem>>
    %c20 = arith.constant 20 : index
    %164 = memref.load %arg4[%c20] : memref<60xf32, #tpu.memory_space<smem>>
    %c21 = arith.constant 21 : index
    %165 = memref.load %arg4[%c21] : memref<60xf32, #tpu.memory_space<smem>>
    %c22 = arith.constant 22 : index
    %166 = memref.load %arg4[%c22] : memref<60xf32, #tpu.memory_space<smem>>
    %c23 = arith.constant 23 : index
    %167 = memref.load %arg4[%c23] : memref<60xf32, #tpu.memory_space<smem>>
    %c24_48 = arith.constant 24 : index
    %168 = memref.load %arg4[%c24_48] : memref<60xf32, #tpu.memory_space<smem>>
    %c25 = arith.constant 25 : index
    %169 = memref.load %arg4[%c25] : memref<60xf32, #tpu.memory_space<smem>>
    %c26 = arith.constant 26 : index
    %170 = memref.load %arg4[%c26] : memref<60xf32, #tpu.memory_space<smem>>
    %c27 = arith.constant 27 : index
    %171 = memref.load %arg4[%c27] : memref<60xf32, #tpu.memory_space<smem>>
    %c28 = arith.constant 28 : index
    %172 = memref.load %arg4[%c28] : memref<60xf32, #tpu.memory_space<smem>>
    %c29 = arith.constant 29 : index
    %173 = memref.load %arg4[%c29] : memref<60xf32, #tpu.memory_space<smem>>
    %c30 = arith.constant 30 : index
    %174 = memref.load %arg4[%c30] : memref<60xf32, #tpu.memory_space<smem>>
    %c31 = arith.constant 31 : index
    %175 = memref.load %arg4[%c31] : memref<60xf32, #tpu.memory_space<smem>>
    %c32 = arith.constant 32 : index
    %176 = memref.load %arg4[%c32] : memref<60xf32, #tpu.memory_space<smem>>
    %c33 = arith.constant 33 : index
    %177 = memref.load %arg4[%c33] : memref<60xf32, #tpu.memory_space<smem>>
    %c34 = arith.constant 34 : index
    %178 = memref.load %arg4[%c34] : memref<60xf32, #tpu.memory_space<smem>>
    %c35 = arith.constant 35 : index
    %179 = memref.load %arg4[%c35] : memref<60xf32, #tpu.memory_space<smem>>
    %c36 = arith.constant 36 : index
    %180 = memref.load %arg4[%c36] : memref<60xf32, #tpu.memory_space<smem>>
    %c37 = arith.constant 37 : index
    %181 = memref.load %arg4[%c37] : memref<60xf32, #tpu.memory_space<smem>>
    %c38 = arith.constant 38 : index
    %182 = memref.load %arg4[%c38] : memref<60xf32, #tpu.memory_space<smem>>
    %c39 = arith.constant 39 : index
    %183 = memref.load %arg4[%c39] : memref<60xf32, #tpu.memory_space<smem>>
    %c40 = arith.constant 40 : index
    %184 = memref.load %arg4[%c40] : memref<60xf32, #tpu.memory_space<smem>>
    %c41 = arith.constant 41 : index
    %185 = memref.load %arg4[%c41] : memref<60xf32, #tpu.memory_space<smem>>
    %c42 = arith.constant 42 : index
    %186 = memref.load %arg4[%c42] : memref<60xf32, #tpu.memory_space<smem>>
    %c43 = arith.constant 43 : index
    %187 = memref.load %arg4[%c43] : memref<60xf32, #tpu.memory_space<smem>>
    %c44 = arith.constant 44 : index
    %188 = memref.load %arg4[%c44] : memref<60xf32, #tpu.memory_space<smem>>
    %c45 = arith.constant 45 : index
    %189 = memref.load %arg4[%c45] : memref<60xf32, #tpu.memory_space<smem>>
    %c46 = arith.constant 46 : index
    %190 = memref.load %arg4[%c46] : memref<60xf32, #tpu.memory_space<smem>>
    %c47 = arith.constant 47 : index
    %191 = memref.load %arg4[%c47] : memref<60xf32, #tpu.memory_space<smem>>
    %c48 = arith.constant 48 : index
    %192 = memref.load %arg4[%c48] : memref<60xf32, #tpu.memory_space<smem>>
    %c49 = arith.constant 49 : index
    %193 = memref.load %arg4[%c49] : memref<60xf32, #tpu.memory_space<smem>>
    %c50 = arith.constant 50 : index
    %194 = memref.load %arg4[%c50] : memref<60xf32, #tpu.memory_space<smem>>
    %c51 = arith.constant 51 : index
    %195 = memref.load %arg4[%c51] : memref<60xf32, #tpu.memory_space<smem>>
    %c52 = arith.constant 52 : index
    %196 = memref.load %arg4[%c52] : memref<60xf32, #tpu.memory_space<smem>>
    %c53 = arith.constant 53 : index
    %197 = memref.load %arg4[%c53] : memref<60xf32, #tpu.memory_space<smem>>
    %c54 = arith.constant 54 : index
    %198 = memref.load %arg4[%c54] : memref<60xf32, #tpu.memory_space<smem>>
    %c55 = arith.constant 55 : index
    %199 = memref.load %arg4[%c55] : memref<60xf32, #tpu.memory_space<smem>>
    %c56 = arith.constant 56 : index
    %200 = memref.load %arg4[%c56] : memref<60xf32, #tpu.memory_space<smem>>
    %c57 = arith.constant 57 : index
    %201 = memref.load %arg4[%c57] : memref<60xf32, #tpu.memory_space<smem>>
    %c58 = arith.constant 58 : index
    %202 = memref.load %arg4[%c58] : memref<60xf32, #tpu.memory_space<smem>>
    %c59 = arith.constant 59 : index
    %203 = memref.load %arg4[%c59] : memref<60xf32, #tpu.memory_space<smem>>
    %c0_49 = arith.constant 0 : index
    %204 = memref.load %arg5[%c0_49] : memref<5xf32, #tpu.memory_space<smem>>
    %c1_50 = arith.constant 1 : index
    %205 = memref.load %arg5[%c1_50] : memref<5xf32, #tpu.memory_space<smem>>
    %c2_51 = arith.constant 2 : index
    %206 = memref.load %arg5[%c2_51] : memref<5xf32, #tpu.memory_space<smem>>
    %c3_52 = arith.constant 3 : index
    %207 = memref.load %arg5[%c3_52] : memref<5xf32, #tpu.memory_space<smem>>
    %c4_53 = arith.constant 4 : index
    %208 = memref.load %arg5[%c4_53] : memref<5xf32, #tpu.memory_space<smem>>
    %c0_54 = arith.constant 0 : index
    %c0_55 = arith.constant 0 : index
    %209 = tpu.strided_load %arg10[%c0_54, %c0_55] {strides = array<i32: 3, 1>} : memref<36x2xf32, #tpu.memory_space<vmem>>, vector<3x2xf32>
    %210 = vector.broadcast %144 : f32 to vector<3x2xf32>
    %211 = arith.mulf %210, %209 : vector<3x2xf32>
    %212 = vector.broadcast %156 : f32 to vector<3x2xf32>
    %213 = arith.mulf %212, %209 : vector<3x2xf32>
    %214 = vector.broadcast %168 : f32 to vector<3x2xf32>
    %215 = arith.mulf %214, %209 : vector<3x2xf32>
    %216 = vector.broadcast %180 : f32 to vector<3x2xf32>
    %217 = arith.mulf %216, %209 : vector<3x2xf32>
    %218 = vector.broadcast %192 : f32 to vector<3x2xf32>
    %219 = arith.mulf %218, %209 : vector<3x2xf32>
    %c12_56 = arith.constant 12 : index
    %c0_57 = arith.constant 0 : index
    %220 = tpu.strided_load %arg10[%c12_56, %c0_57] {strides = array<i32: 3, 1>} : memref<36x2xf32, #tpu.memory_space<vmem>>, vector<3x2xf32>
    %221 = vector.broadcast %148 : f32 to vector<3x2xf32>
    %222 = arith.mulf %221, %220 : vector<3x2xf32>
    %223 = arith.addf %211, %222 : vector<3x2xf32>
    %224 = vector.broadcast %160 : f32 to vector<3x2xf32>
    %225 = arith.mulf %224, %220 : vector<3x2xf32>
    %226 = arith.addf %213, %225 : vector<3x2xf32>
    %227 = vector.broadcast %172 : f32 to vector<3x2xf32>
    %228 = arith.mulf %227, %220 : vector<3x2xf32>
    %229 = arith.addf %215, %228 : vector<3x2xf32>
    %230 = vector.broadcast %184 : f32 to vector<3x2xf32>
    %231 = arith.mulf %230, %220 : vector<3x2xf32>
    %232 = arith.addf %217, %231 : vector<3x2xf32>
    %233 = vector.broadcast %196 : f32 to vector<3x2xf32>
    %234 = arith.mulf %233, %220 : vector<3x2xf32>
    %235 = arith.addf %219, %234 : vector<3x2xf32>
    %c24_58 = arith.constant 24 : index
    %c0_59 = arith.constant 0 : index
    %236 = tpu.strided_load %arg10[%c24_58, %c0_59] {strides = array<i32: 3, 1>} : memref<36x2xf32, #tpu.memory_space<vmem>>, vector<3x2xf32>
    %237 = vector.broadcast %152 : f32 to vector<3x2xf32>
    %238 = arith.mulf %237, %236 : vector<3x2xf32>
    %239 = arith.addf %223, %238 : vector<3x2xf32>
    %240 = vector.broadcast %164 : f32 to vector<3x2xf32>
    %241 = arith.mulf %240, %236 : vector<3x2xf32>
    %242 = arith.addf %226, %241 : vector<3x2xf32>
    %243 = vector.broadcast %176 : f32 to vector<3x2xf32>
    %244 = arith.mulf %243, %236 : vector<3x2xf32>
    %245 = arith.addf %229, %244 : vector<3x2xf32>
    %246 = vector.broadcast %188 : f32 to vector<3x2xf32>
    %247 = arith.mulf %246, %236 : vector<3x2xf32>
    %248 = arith.addf %232, %247 : vector<3x2xf32>
    %249 = vector.broadcast %200 : f32 to vector<3x2xf32>
    %250 = arith.mulf %249, %236 : vector<3x2xf32>
    %251 = arith.addf %235, %250 : vector<3x2xf32>
    %c1_60 = arith.constant 1 : index
    %c0_61 = arith.constant 0 : index
    %252 = tpu.strided_load %arg10[%c1_60, %c0_61] {strides = array<i32: 3, 1>} : memref<36x2xf32, #tpu.memory_space<vmem>>, vector<3x2xf32>
    %253 = vector.broadcast %145 : f32 to vector<3x2xf32>
    %254 = arith.mulf %253, %252 : vector<3x2xf32>
    %255 = arith.addf %239, %254 : vector<3x2xf32>
    %256 = vector.broadcast %157 : f32 to vector<3x2xf32>
    %257 = arith.mulf %256, %252 : vector<3x2xf32>
    %258 = arith.addf %242, %257 : vector<3x2xf32>
    %259 = vector.broadcast %169 : f32 to vector<3x2xf32>
    %260 = arith.mulf %259, %252 : vector<3x2xf32>
    %261 = arith.addf %245, %260 : vector<3x2xf32>
    %262 = vector.broadcast %181 : f32 to vector<3x2xf32>
    %263 = arith.mulf %262, %252 : vector<3x2xf32>
    %264 = arith.addf %248, %263 : vector<3x2xf32>
    %265 = vector.broadcast %193 : f32 to vector<3x2xf32>
    %266 = arith.mulf %265, %252 : vector<3x2xf32>
    %267 = arith.addf %251, %266 : vector<3x2xf32>
    %c13_62 = arith.constant 13 : index
    %c0_63 = arith.constant 0 : index
    %268 = tpu.strided_load %arg10[%c13_62, %c0_63] {strides = array<i32: 3, 1>} : memref<36x2xf32, #tpu.memory_space<vmem>>, vector<3x2xf32>
    %269 = vector.broadcast %149 : f32 to vector<3x2xf32>
    %270 = arith.mulf %269, %268 : vector<3x2xf32>
    %271 = arith.addf %255, %270 : vector<3x2xf32>
    %272 = vector.broadcast %161 : f32 to vector<3x2xf32>
    %273 = arith.mulf %272, %268 : vector<3x2xf32>
    %274 = arith.addf %258, %273 : vector<3x2xf32>
    %275 = vector.broadcast %173 : f32 to vector<3x2xf32>
    %276 = arith.mulf %275, %268 : vector<3x2xf32>
    %277 = arith.addf %261, %276 : vector<3x2xf32>
    %278 = vector.broadcast %185 : f32 to vector<3x2xf32>
    %279 = arith.mulf %278, %268 : vector<3x2xf32>
    %280 = arith.addf %264, %279 : vector<3x2xf32>
    %281 = vector.broadcast %197 : f32 to vector<3x2xf32>
    %282 = arith.mulf %281, %268 : vector<3x2xf32>
    %283 = arith.addf %267, %282 : vector<3x2xf32>
    %c25_64 = arith.constant 25 : index
    %c0_65 = arith.constant 0 : index
    %284 = tpu.strided_load %arg10[%c25_64, %c0_65] {strides = array<i32: 3, 1>} : memref<36x2xf32, #tpu.memory_space<vmem>>, vector<3x2xf32>
    %285 = vector.broadcast %153 : f32 to vector<3x2xf32>
    %286 = arith.mulf %285, %284 : vector<3x2xf32>
    %287 = arith.addf %271, %286 : vector<3x2xf32>
    %288 = vector.broadcast %165 : f32 to vector<3x2xf32>
    %289 = arith.mulf %288, %284 : vector<3x2xf32>
    %290 = arith.addf %274, %289 : vector<3x2xf32>
    %291 = vector.broadcast %177 : f32 to vector<3x2xf32>
    %292 = arith.mulf %291, %284 : vector<3x2xf32>
    %293 = arith.addf %277, %292 : vector<3x2xf32>
    %294 = vector.broadcast %189 : f32 to vector<3x2xf32>
    %295 = arith.mulf %294, %284 : vector<3x2xf32>
    %296 = arith.addf %280, %295 : vector<3x2xf32>
    %297 = vector.broadcast %201 : f32 to vector<3x2xf32>
    %298 = arith.mulf %297, %284 : vector<3x2xf32>
    %299 = arith.addf %283, %298 : vector<3x2xf32>
    %c2_66 = arith.constant 2 : index
    %c0_67 = arith.constant 0 : index
    %300 = tpu.strided_load %arg10[%c2_66, %c0_67] {strides = array<i32: 3, 1>} : memref<36x2xf32, #tpu.memory_space<vmem>>, vector<3x2xf32>
    %301 = vector.broadcast %146 : f32 to vector<3x2xf32>
    %302 = arith.mulf %301, %300 : vector<3x2xf32>
    %303 = arith.addf %287, %302 : vector<3x2xf32>
    %304 = vector.broadcast %158 : f32 to vector<3x2xf32>
    %305 = arith.mulf %304, %300 : vector<3x2xf32>
    %306 = arith.addf %290, %305 : vector<3x2xf32>
    %307 = vector.broadcast %170 : f32 to vector<3x2xf32>
    %308 = arith.mulf %307, %300 : vector<3x2xf32>
    %309 = arith.addf %293, %308 : vector<3x2xf32>
    %310 = vector.broadcast %182 : f32 to vector<3x2xf32>
    %311 = arith.mulf %310, %300 : vector<3x2xf32>
    %312 = arith.addf %296, %311 : vector<3x2xf32>
    %313 = vector.broadcast %194 : f32 to vector<3x2xf32>
    %314 = arith.mulf %313, %300 : vector<3x2xf32>
    %315 = arith.addf %299, %314 : vector<3x2xf32>
    %c14_68 = arith.constant 14 : index
    %c0_69 = arith.constant 0 : index
    %316 = tpu.strided_load %arg10[%c14_68, %c0_69] {strides = array<i32: 3, 1>} : memref<36x2xf32, #tpu.memory_space<vmem>>, vector<3x2xf32>
    %317 = vector.broadcast %150 : f32 to vector<3x2xf32>
    %318 = arith.mulf %317, %316 : vector<3x2xf32>
    %319 = arith.addf %303, %318 : vector<3x2xf32>
    %320 = vector.broadcast %162 : f32 to vector<3x2xf32>
    %321 = arith.mulf %320, %316 : vector<3x2xf32>
    %322 = arith.addf %306, %321 : vector<3x2xf32>
    %323 = vector.broadcast %174 : f32 to vector<3x2xf32>
    %324 = arith.mulf %323, %316 : vector<3x2xf32>
    %325 = arith.addf %309, %324 : vector<3x2xf32>
    %326 = vector.broadcast %186 : f32 to vector<3x2xf32>
    %327 = arith.mulf %326, %316 : vector<3x2xf32>
    %328 = arith.addf %312, %327 : vector<3x2xf32>
    %329 = vector.broadcast %198 : f32 to vector<3x2xf32>
    %330 = arith.mulf %329, %316 : vector<3x2xf32>
    %331 = arith.addf %315, %330 : vector<3x2xf32>
    %c26_70 = arith.constant 26 : index
    %c0_71 = arith.constant 0 : index
    %332 = tpu.strided_load %arg10[%c26_70, %c0_71] {strides = array<i32: 3, 1>} : memref<36x2xf32, #tpu.memory_space<vmem>>, vector<3x2xf32>
    %333 = vector.broadcast %154 : f32 to vector<3x2xf32>
    %334 = arith.mulf %333, %332 : vector<3x2xf32>
    %335 = arith.addf %319, %334 : vector<3x2xf32>
    %336 = vector.broadcast %166 : f32 to vector<3x2xf32>
    %337 = arith.mulf %336, %332 : vector<3x2xf32>
    %338 = arith.addf %322, %337 : vector<3x2xf32>
    %339 = vector.broadcast %178 : f32 to vector<3x2xf32>
    %340 = arith.mulf %339, %332 : vector<3x2xf32>
    %341 = arith.addf %325, %340 : vector<3x2xf32>
    %342 = vector.broadcast %190 : f32 to vector<3x2xf32>
    %343 = arith.mulf %342, %332 : vector<3x2xf32>
    %344 = arith.addf %328, %343 : vector<3x2xf32>
    %345 = vector.broadcast %202 : f32 to vector<3x2xf32>
    %346 = arith.mulf %345, %332 : vector<3x2xf32>
    %347 = arith.addf %331, %346 : vector<3x2xf32>
    %c3_72 = arith.constant 3 : index
    %c0_73 = arith.constant 0 : index
    %348 = tpu.strided_load %arg10[%c3_72, %c0_73] {strides = array<i32: 3, 1>} : memref<36x2xf32, #tpu.memory_space<vmem>>, vector<3x2xf32>
    %349 = vector.broadcast %147 : f32 to vector<3x2xf32>
    %350 = arith.mulf %349, %348 : vector<3x2xf32>
    %351 = arith.addf %335, %350 : vector<3x2xf32>
    %352 = vector.broadcast %159 : f32 to vector<3x2xf32>
    %353 = arith.mulf %352, %348 : vector<3x2xf32>
    %354 = arith.addf %338, %353 : vector<3x2xf32>
    %355 = vector.broadcast %171 : f32 to vector<3x2xf32>
    %356 = arith.mulf %355, %348 : vector<3x2xf32>
    %357 = arith.addf %341, %356 : vector<3x2xf32>
    %358 = vector.broadcast %183 : f32 to vector<3x2xf32>
    %359 = arith.mulf %358, %348 : vector<3x2xf32>
    %360 = arith.addf %344, %359 : vector<3x2xf32>
    %361 = vector.broadcast %195 : f32 to vector<3x2xf32>
    %362 = arith.mulf %361, %348 : vector<3x2xf32>
    %363 = arith.addf %347, %362 : vector<3x2xf32>
    %c15_74 = arith.constant 15 : index
    %c0_75 = arith.constant 0 : index
    %364 = tpu.strided_load %arg10[%c15_74, %c0_75] {strides = array<i32: 3, 1>} : memref<36x2xf32, #tpu.memory_space<vmem>>, vector<3x2xf32>
    %365 = vector.broadcast %151 : f32 to vector<3x2xf32>
    %366 = arith.mulf %365, %364 : vector<3x2xf32>
    %367 = arith.addf %351, %366 : vector<3x2xf32>
    %368 = vector.broadcast %163 : f32 to vector<3x2xf32>
    %369 = arith.mulf %368, %364 : vector<3x2xf32>
    %370 = arith.addf %354, %369 : vector<3x2xf32>
    %371 = vector.broadcast %175 : f32 to vector<3x2xf32>
    %372 = arith.mulf %371, %364 : vector<3x2xf32>
    %373 = arith.addf %357, %372 : vector<3x2xf32>
    %374 = vector.broadcast %187 : f32 to vector<3x2xf32>
    %375 = arith.mulf %374, %364 : vector<3x2xf32>
    %376 = arith.addf %360, %375 : vector<3x2xf32>
    %377 = vector.broadcast %199 : f32 to vector<3x2xf32>
    %378 = arith.mulf %377, %364 : vector<3x2xf32>
    %379 = arith.addf %363, %378 : vector<3x2xf32>
    %c27_76 = arith.constant 27 : index
    %c0_77 = arith.constant 0 : index
    %380 = tpu.strided_load %arg10[%c27_76, %c0_77] {strides = array<i32: 3, 1>} : memref<36x2xf32, #tpu.memory_space<vmem>>, vector<3x2xf32>
    %381 = vector.broadcast %155 : f32 to vector<3x2xf32>
    %382 = arith.mulf %381, %380 : vector<3x2xf32>
    %383 = arith.addf %367, %382 : vector<3x2xf32>
    %384 = vector.broadcast %167 : f32 to vector<3x2xf32>
    %385 = arith.mulf %384, %380 : vector<3x2xf32>
    %386 = arith.addf %370, %385 : vector<3x2xf32>
    %387 = vector.broadcast %179 : f32 to vector<3x2xf32>
    %388 = arith.mulf %387, %380 : vector<3x2xf32>
    %389 = arith.addf %373, %388 : vector<3x2xf32>
    %390 = vector.broadcast %191 : f32 to vector<3x2xf32>
    %391 = arith.mulf %390, %380 : vector<3x2xf32>
    %392 = arith.addf %376, %391 : vector<3x2xf32>
    %393 = vector.broadcast %203 : f32 to vector<3x2xf32>
    %394 = arith.mulf %393, %380 : vector<3x2xf32>
    %395 = arith.addf %379, %394 : vector<3x2xf32>
    %c1_78 = arith.constant 1 : index
    %c0_79 = arith.constant 0 : index
    %396 = tpu.strided_load %arg10[%c1_78, %c0_79] {strides = array<i32: 3, 1>} : memref<36x2xf32, #tpu.memory_space<vmem>>, vector<3x2xf32>
    %397 = vector.broadcast %144 : f32 to vector<3x2xf32>
    %398 = arith.mulf %397, %396 : vector<3x2xf32>
    %399 = vector.broadcast %156 : f32 to vector<3x2xf32>
    %400 = arith.mulf %399, %396 : vector<3x2xf32>
    %401 = vector.broadcast %168 : f32 to vector<3x2xf32>
    %402 = arith.mulf %401, %396 : vector<3x2xf32>
    %403 = vector.broadcast %180 : f32 to vector<3x2xf32>
    %404 = arith.mulf %403, %396 : vector<3x2xf32>
    %405 = vector.broadcast %192 : f32 to vector<3x2xf32>
    %406 = arith.mulf %405, %396 : vector<3x2xf32>
    %c13_80 = arith.constant 13 : index
    %c0_81 = arith.constant 0 : index
    %407 = tpu.strided_load %arg10[%c13_80, %c0_81] {strides = array<i32: 3, 1>} : memref<36x2xf32, #tpu.memory_space<vmem>>, vector<3x2xf32>
    %408 = vector.broadcast %148 : f32 to vector<3x2xf32>
    %409 = arith.mulf %408, %407 : vector<3x2xf32>
    %410 = arith.addf %398, %409 : vector<3x2xf32>
    %411 = vector.broadcast %160 : f32 to vector<3x2xf32>
    %412 = arith.mulf %411, %407 : vector<3x2xf32>
    %413 = arith.addf %400, %412 : vector<3x2xf32>
    %414 = vector.broadcast %172 : f32 to vector<3x2xf32>
    %415 = arith.mulf %414, %407 : vector<3x2xf32>
    %416 = arith.addf %402, %415 : vector<3x2xf32>
    %417 = vector.broadcast %184 : f32 to vector<3x2xf32>
    %418 = arith.mulf %417, %407 : vector<3x2xf32>
    %419 = arith.addf %404, %418 : vector<3x2xf32>
    %420 = vector.broadcast %196 : f32 to vector<3x2xf32>
    %421 = arith.mulf %420, %407 : vector<3x2xf32>
    %422 = arith.addf %406, %421 : vector<3x2xf32>
    %c25_82 = arith.constant 25 : index
    %c0_83 = arith.constant 0 : index
    %423 = tpu.strided_load %arg10[%c25_82, %c0_83] {strides = array<i32: 3, 1>} : memref<36x2xf32, #tpu.memory_space<vmem>>, vector<3x2xf32>
    %424 = vector.broadcast %152 : f32 to vector<3x2xf32>
    %425 = arith.mulf %424, %423 : vector<3x2xf32>
    %426 = arith.addf %410, %425 : vector<3x2xf32>
    %427 = vector.broadcast %164 : f32 to vector<3x2xf32>
    %428 = arith.mulf %427, %423 : vector<3x2xf32>
    %429 = arith.addf %413, %428 : vector<3x2xf32>
    %430 = vector.broadcast %176 : f32 to vector<3x2xf32>
    %431 = arith.mulf %430, %423 : vector<3x2xf32>
    %432 = arith.addf %416, %431 : vector<3x2xf32>
    %433 = vector.broadcast %188 : f32 to vector<3x2xf32>
    %434 = arith.mulf %433, %423 : vector<3x2xf32>
    %435 = arith.addf %419, %434 : vector<3x2xf32>
    %436 = vector.broadcast %200 : f32 to vector<3x2xf32>
    %437 = arith.mulf %436, %423 : vector<3x2xf32>
    %438 = arith.addf %422, %437 : vector<3x2xf32>
    %c2_84 = arith.constant 2 : index
    %c0_85 = arith.constant 0 : index
    %439 = tpu.strided_load %arg10[%c2_84, %c0_85] {strides = array<i32: 3, 1>} : memref<36x2xf32, #tpu.memory_space<vmem>>, vector<3x2xf32>
    %440 = vector.broadcast %145 : f32 to vector<3x2xf32>
    %441 = arith.mulf %440, %439 : vector<3x2xf32>
    %442 = arith.addf %426, %441 : vector<3x2xf32>
    %443 = vector.broadcast %157 : f32 to vector<3x2xf32>
    %444 = arith.mulf %443, %439 : vector<3x2xf32>
    %445 = arith.addf %429, %444 : vector<3x2xf32>
    %446 = vector.broadcast %169 : f32 to vector<3x2xf32>
    %447 = arith.mulf %446, %439 : vector<3x2xf32>
    %448 = arith.addf %432, %447 : vector<3x2xf32>
    %449 = vector.broadcast %181 : f32 to vector<3x2xf32>
    %450 = arith.mulf %449, %439 : vector<3x2xf32>
    %451 = arith.addf %435, %450 : vector<3x2xf32>
    %452 = vector.broadcast %193 : f32 to vector<3x2xf32>
    %453 = arith.mulf %452, %439 : vector<3x2xf32>
    %454 = arith.addf %438, %453 : vector<3x2xf32>
    %c14_86 = arith.constant 14 : index
    %c0_87 = arith.constant 0 : index
    %455 = tpu.strided_load %arg10[%c14_86, %c0_87] {strides = array<i32: 3, 1>} : memref<36x2xf32, #tpu.memory_space<vmem>>, vector<3x2xf32>
    %456 = vector.broadcast %149 : f32 to vector<3x2xf32>
    %457 = arith.mulf %456, %455 : vector<3x2xf32>
    %458 = arith.addf %442, %457 : vector<3x2xf32>
    %459 = vector.broadcast %161 : f32 to vector<3x2xf32>
    %460 = arith.mulf %459, %455 : vector<3x2xf32>
    %461 = arith.addf %445, %460 : vector<3x2xf32>
    %462 = vector.broadcast %173 : f32 to vector<3x2xf32>
    %463 = arith.mulf %462, %455 : vector<3x2xf32>
    %464 = arith.addf %448, %463 : vector<3x2xf32>
    %465 = vector.broadcast %185 : f32 to vector<3x2xf32>
    %466 = arith.mulf %465, %455 : vector<3x2xf32>
    %467 = arith.addf %451, %466 : vector<3x2xf32>
    %468 = vector.broadcast %197 : f32 to vector<3x2xf32>
    %469 = arith.mulf %468, %455 : vector<3x2xf32>
    %470 = arith.addf %454, %469 : vector<3x2xf32>
    %c26_88 = arith.constant 26 : index
    %c0_89 = arith.constant 0 : index
    %471 = tpu.strided_load %arg10[%c26_88, %c0_89] {strides = array<i32: 3, 1>} : memref<36x2xf32, #tpu.memory_space<vmem>>, vector<3x2xf32>
    %472 = vector.broadcast %153 : f32 to vector<3x2xf32>
    %473 = arith.mulf %472, %471 : vector<3x2xf32>
    %474 = arith.addf %458, %473 : vector<3x2xf32>
    %475 = vector.broadcast %165 : f32 to vector<3x2xf32>
    %476 = arith.mulf %475, %471 : vector<3x2xf32>
    %477 = arith.addf %461, %476 : vector<3x2xf32>
    %478 = vector.broadcast %177 : f32 to vector<3x2xf32>
    %479 = arith.mulf %478, %471 : vector<3x2xf32>
    %480 = arith.addf %464, %479 : vector<3x2xf32>
    %481 = vector.broadcast %189 : f32 to vector<3x2xf32>
    %482 = arith.mulf %481, %471 : vector<3x2xf32>
    %483 = arith.addf %467, %482 : vector<3x2xf32>
    %484 = vector.broadcast %201 : f32 to vector<3x2xf32>
    %485 = arith.mulf %484, %471 : vector<3x2xf32>
    %486 = arith.addf %470, %485 : vector<3x2xf32>
    %c3_90 = arith.constant 3 : index
    %c0_91 = arith.constant 0 : index
    %487 = tpu.strided_load %arg10[%c3_90, %c0_91] {strides = array<i32: 3, 1>} : memref<36x2xf32, #tpu.memory_space<vmem>>, vector<3x2xf32>
    %488 = vector.broadcast %146 : f32 to vector<3x2xf32>
    %489 = arith.mulf %488, %487 : vector<3x2xf32>
    %490 = arith.addf %474, %489 : vector<3x2xf32>
    %491 = vector.broadcast %158 : f32 to vector<3x2xf32>
    %492 = arith.mulf %491, %487 : vector<3x2xf32>
    %493 = arith.addf %477, %492 : vector<3x2xf32>
    %494 = vector.broadcast %170 : f32 to vector<3x2xf32>
    %495 = arith.mulf %494, %487 : vector<3x2xf32>
    %496 = arith.addf %480, %495 : vector<3x2xf32>
    %497 = vector.broadcast %182 : f32 to vector<3x2xf32>
    %498 = arith.mulf %497, %487 : vector<3x2xf32>
    %499 = arith.addf %483, %498 : vector<3x2xf32>
    %500 = vector.broadcast %194 : f32 to vector<3x2xf32>
    %501 = arith.mulf %500, %487 : vector<3x2xf32>
    %502 = arith.addf %486, %501 : vector<3x2xf32>
    %c15_92 = arith.constant 15 : index
    %c0_93 = arith.constant 0 : index
    %503 = tpu.strided_load %arg10[%c15_92, %c0_93] {strides = array<i32: 3, 1>} : memref<36x2xf32, #tpu.memory_space<vmem>>, vector<3x2xf32>
    %504 = vector.broadcast %150 : f32 to vector<3x2xf32>
    %505 = arith.mulf %504, %503 : vector<3x2xf32>
    %506 = arith.addf %490, %505 : vector<3x2xf32>
    %507 = vector.broadcast %162 : f32 to vector<3x2xf32>
    %508 = arith.mulf %507, %503 : vector<3x2xf32>
    %509 = arith.addf %493, %508 : vector<3x2xf32>
    %510 = vector.broadcast %174 : f32 to vector<3x2xf32>
    %511 = arith.mulf %510, %503 : vector<3x2xf32>
    %512 = arith.addf %496, %511 : vector<3x2xf32>
    %513 = vector.broadcast %186 : f32 to vector<3x2xf32>
    %514 = arith.mulf %513, %503 : vector<3x2xf32>
    %515 = arith.addf %499, %514 : vector<3x2xf32>
    %516 = vector.broadcast %198 : f32 to vector<3x2xf32>
    %517 = arith.mulf %516, %503 : vector<3x2xf32>
    %518 = arith.addf %502, %517 : vector<3x2xf32>
    %c27_94 = arith.constant 27 : index
    %c0_95 = arith.constant 0 : index
    %519 = tpu.strided_load %arg10[%c27_94, %c0_95] {strides = array<i32: 3, 1>} : memref<36x2xf32, #tpu.memory_space<vmem>>, vector<3x2xf32>
    %520 = vector.broadcast %154 : f32 to vector<3x2xf32>
    %521 = arith.mulf %520, %519 : vector<3x2xf32>
    %522 = arith.addf %506, %521 : vector<3x2xf32>
    %523 = vector.broadcast %166 : f32 to vector<3x2xf32>
    %524 = arith.mulf %523, %519 : vector<3x2xf32>
    %525 = arith.addf %509, %524 : vector<3x2xf32>
    %526 = vector.broadcast %178 : f32 to vector<3x2xf32>
    %527 = arith.mulf %526, %519 : vector<3x2xf32>
    %528 = arith.addf %512, %527 : vector<3x2xf32>
    %529 = vector.broadcast %190 : f32 to vector<3x2xf32>
    %530 = arith.mulf %529, %519 : vector<3x2xf32>
    %531 = arith.addf %515, %530 : vector<3x2xf32>
    %532 = vector.broadcast %202 : f32 to vector<3x2xf32>
    %533 = arith.mulf %532, %519 : vector<3x2xf32>
    %534 = arith.addf %518, %533 : vector<3x2xf32>
    %c4_96 = arith.constant 4 : index
    %c0_97 = arith.constant 0 : index
    %535 = tpu.strided_load %arg10[%c4_96, %c0_97] {strides = array<i32: 3, 1>} : memref<36x2xf32, #tpu.memory_space<vmem>>, vector<3x2xf32>
    %536 = vector.broadcast %147 : f32 to vector<3x2xf32>
    %537 = arith.mulf %536, %535 : vector<3x2xf32>
    %538 = arith.addf %522, %537 : vector<3x2xf32>
    %539 = vector.broadcast %159 : f32 to vector<3x2xf32>
    %540 = arith.mulf %539, %535 : vector<3x2xf32>
    %541 = arith.addf %525, %540 : vector<3x2xf32>
    %542 = vector.broadcast %171 : f32 to vector<3x2xf32>
    %543 = arith.mulf %542, %535 : vector<3x2xf32>
    %544 = arith.addf %528, %543 : vector<3x2xf32>
    %545 = vector.broadcast %183 : f32 to vector<3x2xf32>
    %546 = arith.mulf %545, %535 : vector<3x2xf32>
    %547 = arith.addf %531, %546 : vector<3x2xf32>
    %548 = vector.broadcast %195 : f32 to vector<3x2xf32>
    %549 = arith.mulf %548, %535 : vector<3x2xf32>
    %550 = arith.addf %534, %549 : vector<3x2xf32>
    %c16_98 = arith.constant 16 : index
    %c0_99 = arith.constant 0 : index
    %551 = tpu.strided_load %arg10[%c16_98, %c0_99] {strides = array<i32: 3, 1>} : memref<36x2xf32, #tpu.memory_space<vmem>>, vector<3x2xf32>
    %552 = vector.broadcast %151 : f32 to vector<3x2xf32>
    %553 = arith.mulf %552, %551 : vector<3x2xf32>
    %554 = arith.addf %538, %553 : vector<3x2xf32>
    %555 = vector.broadcast %163 : f32 to vector<3x2xf32>
    %556 = arith.mulf %555, %551 : vector<3x2xf32>
    %557 = arith.addf %541, %556 : vector<3x2xf32>
    %558 = vector.broadcast %175 : f32 to vector<3x2xf32>
    %559 = arith.mulf %558, %551 : vector<3x2xf32>
    %560 = arith.addf %544, %559 : vector<3x2xf32>
    %561 = vector.broadcast %187 : f32 to vector<3x2xf32>
    %562 = arith.mulf %561, %551 : vector<3x2xf32>
    %563 = arith.addf %547, %562 : vector<3x2xf32>
    %564 = vector.broadcast %199 : f32 to vector<3x2xf32>
    %565 = arith.mulf %564, %551 : vector<3x2xf32>
    %566 = arith.addf %550, %565 : vector<3x2xf32>
    %c28_100 = arith.constant 28 : index
    %c0_101 = arith.constant 0 : index
    %567 = tpu.strided_load %arg10[%c28_100, %c0_101] {strides = array<i32: 3, 1>} : memref<36x2xf32, #tpu.memory_space<vmem>>, vector<3x2xf32>
    %568 = vector.broadcast %155 : f32 to vector<3x2xf32>
    %569 = arith.mulf %568, %567 : vector<3x2xf32>
    %570 = arith.addf %554, %569 : vector<3x2xf32>
    %571 = vector.broadcast %167 : f32 to vector<3x2xf32>
    %572 = arith.mulf %571, %567 : vector<3x2xf32>
    %573 = arith.addf %557, %572 : vector<3x2xf32>
    %574 = vector.broadcast %179 : f32 to vector<3x2xf32>
    %575 = arith.mulf %574, %567 : vector<3x2xf32>
    %576 = arith.addf %560, %575 : vector<3x2xf32>
    %577 = vector.broadcast %191 : f32 to vector<3x2xf32>
    %578 = arith.mulf %577, %567 : vector<3x2xf32>
    %579 = arith.addf %563, %578 : vector<3x2xf32>
    %580 = vector.broadcast %203 : f32 to vector<3x2xf32>
    %581 = arith.mulf %580, %567 : vector<3x2xf32>
    %582 = arith.addf %566, %581 : vector<3x2xf32>
    %583 = arith.maximumf %383, %570 : vector<3x2xf32>
    %584 = arith.maximumf %386, %573 : vector<3x2xf32>
    %585 = arith.maximumf %389, %576 : vector<3x2xf32>
    %586 = arith.maximumf %392, %579 : vector<3x2xf32>
    %587 = arith.maximumf %395, %582 : vector<3x2xf32>
    %c2_102 = arith.constant 2 : index
    %c0_103 = arith.constant 0 : index
    %588 = tpu.strided_load %arg10[%c2_102, %c0_103] {strides = array<i32: 3, 1>} : memref<36x2xf32, #tpu.memory_space<vmem>>, vector<3x2xf32>
    %589 = vector.broadcast %144 : f32 to vector<3x2xf32>
    %590 = arith.mulf %589, %588 : vector<3x2xf32>
    %591 = vector.broadcast %156 : f32 to vector<3x2xf32>
    %592 = arith.mulf %591, %588 : vector<3x2xf32>
    %593 = vector.broadcast %168 : f32 to vector<3x2xf32>
    %594 = arith.mulf %593, %588 : vector<3x2xf32>
    %595 = vector.broadcast %180 : f32 to vector<3x2xf32>
    %596 = arith.mulf %595, %588 : vector<3x2xf32>
    %597 = vector.broadcast %192 : f32 to vector<3x2xf32>
    %598 = arith.mulf %597, %588 : vector<3x2xf32>
    %c14_104 = arith.constant 14 : index
    %c0_105 = arith.constant 0 : index
    %599 = tpu.strided_load %arg10[%c14_104, %c0_105] {strides = array<i32: 3, 1>} : memref<36x2xf32, #tpu.memory_space<vmem>>, vector<3x2xf32>
    %600 = vector.broadcast %148 : f32 to vector<3x2xf32>
    %601 = arith.mulf %600, %599 : vector<3x2xf32>
    %602 = arith.addf %590, %601 : vector<3x2xf32>
    %603 = vector.broadcast %160 : f32 to vector<3x2xf32>
    %604 = arith.mulf %603, %599 : vector<3x2xf32>
    %605 = arith.addf %592, %604 : vector<3x2xf32>
    %606 = vector.broadcast %172 : f32 to vector<3x2xf32>
    %607 = arith.mulf %606, %599 : vector<3x2xf32>
    %608 = arith.addf %594, %607 : vector<3x2xf32>
    %609 = vector.broadcast %184 : f32 to vector<3x2xf32>
    %610 = arith.mulf %609, %599 : vector<3x2xf32>
    %611 = arith.addf %596, %610 : vector<3x2xf32>
    %612 = vector.broadcast %196 : f32 to vector<3x2xf32>
    %613 = arith.mulf %612, %599 : vector<3x2xf32>
    %614 = arith.addf %598, %613 : vector<3x2xf32>
    %c26_106 = arith.constant 26 : index
    %c0_107 = arith.constant 0 : index
    %615 = tpu.strided_load %arg10[%c26_106, %c0_107] {strides = array<i32: 3, 1>} : memref<36x2xf32, #tpu.memory_space<vmem>>, vector<3x2xf32>
    %616 = vector.broadcast %152 : f32 to vector<3x2xf32>
    %617 = arith.mulf %616, %615 : vector<3x2xf32>
    %618 = arith.addf %602, %617 : vector<3x2xf32>
    %619 = vector.broadcast %164 : f32 to vector<3x2xf32>
    %620 = arith.mulf %619, %615 : vector<3x2xf32>
    %621 = arith.addf %605, %620 : vector<3x2xf32>
    %622 = vector.broadcast %176 : f32 to vector<3x2xf32>
    %623 = arith.mulf %622, %615 : vector<3x2xf32>
    %624 = arith.addf %608, %623 : vector<3x2xf32>
    %625 = vector.broadcast %188 : f32 to vector<3x2xf32>
    %626 = arith.mulf %625, %615 : vector<3x2xf32>
    %627 = arith.addf %611, %626 : vector<3x2xf32>
    %628 = vector.broadcast %200 : f32 to vector<3x2xf32>
    %629 = arith.mulf %628, %615 : vector<3x2xf32>
    %630 = arith.addf %614, %629 : vector<3x2xf32>
    %c3_108 = arith.constant 3 : index
    %c0_109 = arith.constant 0 : index
    %631 = tpu.strided_load %arg10[%c3_108, %c0_109] {strides = array<i32: 3, 1>} : memref<36x2xf32, #tpu.memory_space<vmem>>, vector<3x2xf32>
    %632 = vector.broadcast %145 : f32 to vector<3x2xf32>
    %633 = arith.mulf %632, %631 : vector<3x2xf32>
    %634 = arith.addf %618, %633 : vector<3x2xf32>
    %635 = vector.broadcast %157 : f32 to vector<3x2xf32>
    %636 = arith.mulf %635, %631 : vector<3x2xf32>
    %637 = arith.addf %621, %636 : vector<3x2xf32>
    %638 = vector.broadcast %169 : f32 to vector<3x2xf32>
    %639 = arith.mulf %638, %631 : vector<3x2xf32>
    %640 = arith.addf %624, %639 : vector<3x2xf32>
    %641 = vector.broadcast %181 : f32 to vector<3x2xf32>
    %642 = arith.mulf %641, %631 : vector<3x2xf32>
    %643 = arith.addf %627, %642 : vector<3x2xf32>
    %644 = vector.broadcast %193 : f32 to vector<3x2xf32>
    %645 = arith.mulf %644, %631 : vector<3x2xf32>
    %646 = arith.addf %630, %645 : vector<3x2xf32>
    %c15_110 = arith.constant 15 : index
    %c0_111 = arith.constant 0 : index
    %647 = tpu.strided_load %arg10[%c15_110, %c0_111] {strides = array<i32: 3, 1>} : memref<36x2xf32, #tpu.memory_space<vmem>>, vector<3x2xf32>
    %648 = vector.broadcast %149 : f32 to vector<3x2xf32>
    %649 = arith.mulf %648, %647 : vector<3x2xf32>
    %650 = arith.addf %634, %649 : vector<3x2xf32>
    %651 = vector.broadcast %161 : f32 to vector<3x2xf32>
    %652 = arith.mulf %651, %647 : vector<3x2xf32>
    %653 = arith.addf %637, %652 : vector<3x2xf32>
    %654 = vector.broadcast %173 : f32 to vector<3x2xf32>
    %655 = arith.mulf %654, %647 : vector<3x2xf32>
    %656 = arith.addf %640, %655 : vector<3x2xf32>
    %657 = vector.broadcast %185 : f32 to vector<3x2xf32>
    %658 = arith.mulf %657, %647 : vector<3x2xf32>
    %659 = arith.addf %643, %658 : vector<3x2xf32>
    %660 = vector.broadcast %197 : f32 to vector<3x2xf32>
    %661 = arith.mulf %660, %647 : vector<3x2xf32>
    %662 = arith.addf %646, %661 : vector<3x2xf32>
    %c27_112 = arith.constant 27 : index
    %c0_113 = arith.constant 0 : index
    %663 = tpu.strided_load %arg10[%c27_112, %c0_113] {strides = array<i32: 3, 1>} : memref<36x2xf32, #tpu.memory_space<vmem>>, vector<3x2xf32>
    %664 = vector.broadcast %153 : f32 to vector<3x2xf32>
    %665 = arith.mulf %664, %663 : vector<3x2xf32>
    %666 = arith.addf %650, %665 : vector<3x2xf32>
    %667 = vector.broadcast %165 : f32 to vector<3x2xf32>
    %668 = arith.mulf %667, %663 : vector<3x2xf32>
    %669 = arith.addf %653, %668 : vector<3x2xf32>
    %670 = vector.broadcast %177 : f32 to vector<3x2xf32>
    %671 = arith.mulf %670, %663 : vector<3x2xf32>
    %672 = arith.addf %656, %671 : vector<3x2xf32>
    %673 = vector.broadcast %189 : f32 to vector<3x2xf32>
    %674 = arith.mulf %673, %663 : vector<3x2xf32>
    %675 = arith.addf %659, %674 : vector<3x2xf32>
    %676 = vector.broadcast %201 : f32 to vector<3x2xf32>
    %677 = arith.mulf %676, %663 : vector<3x2xf32>
    %678 = arith.addf %662, %677 : vector<3x2xf32>
    %c4_114 = arith.constant 4 : index
    %c0_115 = arith.constant 0 : index
    %679 = tpu.strided_load %arg10[%c4_114, %c0_115] {strides = array<i32: 3, 1>} : memref<36x2xf32, #tpu.memory_space<vmem>>, vector<3x2xf32>
    %680 = vector.broadcast %146 : f32 to vector<3x2xf32>
    %681 = arith.mulf %680, %679 : vector<3x2xf32>
    %682 = arith.addf %666, %681 : vector<3x2xf32>
    %683 = vector.broadcast %158 : f32 to vector<3x2xf32>
    %684 = arith.mulf %683, %679 : vector<3x2xf32>
    %685 = arith.addf %669, %684 : vector<3x2xf32>
    %686 = vector.broadcast %170 : f32 to vector<3x2xf32>
    %687 = arith.mulf %686, %679 : vector<3x2xf32>
    %688 = arith.addf %672, %687 : vector<3x2xf32>
    %689 = vector.broadcast %182 : f32 to vector<3x2xf32>
    %690 = arith.mulf %689, %679 : vector<3x2xf32>
    %691 = arith.addf %675, %690 : vector<3x2xf32>
    %692 = vector.broadcast %194 : f32 to vector<3x2xf32>
    %693 = arith.mulf %692, %679 : vector<3x2xf32>
    %694 = arith.addf %678, %693 : vector<3x2xf32>
    %c16_116 = arith.constant 16 : index
    %c0_117 = arith.constant 0 : index
    %695 = tpu.strided_load %arg10[%c16_116, %c0_117] {strides = array<i32: 3, 1>} : memref<36x2xf32, #tpu.memory_space<vmem>>, vector<3x2xf32>
    %696 = vector.broadcast %150 : f32 to vector<3x2xf32>
    %697 = arith.mulf %696, %695 : vector<3x2xf32>
    %698 = arith.addf %682, %697 : vector<3x2xf32>
    %699 = vector.broadcast %162 : f32 to vector<3x2xf32>
    %700 = arith.mulf %699, %695 : vector<3x2xf32>
    %701 = arith.addf %685, %700 : vector<3x2xf32>
    %702 = vector.broadcast %174 : f32 to vector<3x2xf32>
    %703 = arith.mulf %702, %695 : vector<3x2xf32>
    %704 = arith.addf %688, %703 : vector<3x2xf32>
    %705 = vector.broadcast %186 : f32 to vector<3x2xf32>
    %706 = arith.mulf %705, %695 : vector<3x2xf32>
    %707 = arith.addf %691, %706 : vector<3x2xf32>
    %708 = vector.broadcast %198 : f32 to vector<3x2xf32>
    %709 = arith.mulf %708, %695 : vector<3x2xf32>
    %710 = arith.addf %694, %709 : vector<3x2xf32>
    %c28_118 = arith.constant 28 : index
    %c0_119 = arith.constant 0 : index
    %711 = tpu.strided_load %arg10[%c28_118, %c0_119] {strides = array<i32: 3, 1>} : memref<36x2xf32, #tpu.memory_space<vmem>>, vector<3x2xf32>
    %712 = vector.broadcast %154 : f32 to vector<3x2xf32>
    %713 = arith.mulf %712, %711 : vector<3x2xf32>
    %714 = arith.addf %698, %713 : vector<3x2xf32>
    %715 = vector.broadcast %166 : f32 to vector<3x2xf32>
    %716 = arith.mulf %715, %711 : vector<3x2xf32>
    %717 = arith.addf %701, %716 : vector<3x2xf32>
    %718 = vector.broadcast %178 : f32 to vector<3x2xf32>
    %719 = arith.mulf %718, %711 : vector<3x2xf32>
    %720 = arith.addf %704, %719 : vector<3x2xf32>
    %721 = vector.broadcast %190 : f32 to vector<3x2xf32>
    %722 = arith.mulf %721, %711 : vector<3x2xf32>
    %723 = arith.addf %707, %722 : vector<3x2xf32>
    %724 = vector.broadcast %202 : f32 to vector<3x2xf32>
    %725 = arith.mulf %724, %711 : vector<3x2xf32>
    %726 = arith.addf %710, %725 : vector<3x2xf32>
    %c5_120 = arith.constant 5 : index
    %c0_121 = arith.constant 0 : index
    %727 = tpu.strided_load %arg10[%c5_120, %c0_121] {strides = array<i32: 3, 1>} : memref<36x2xf32, #tpu.memory_space<vmem>>, vector<3x2xf32>
    %728 = vector.broadcast %147 : f32 to vector<3x2xf32>
    %729 = arith.mulf %728, %727 : vector<3x2xf32>
    %730 = arith.addf %714, %729 : vector<3x2xf32>
    %731 = vector.broadcast %159 : f32 to vector<3x2xf32>
    %732 = arith.mulf %731, %727 : vector<3x2xf32>
    %733 = arith.addf %717, %732 : vector<3x2xf32>
    %734 = vector.broadcast %171 : f32 to vector<3x2xf32>
    %735 = arith.mulf %734, %727 : vector<3x2xf32>
    %736 = arith.addf %720, %735 : vector<3x2xf32>
    %737 = vector.broadcast %183 : f32 to vector<3x2xf32>
    %738 = arith.mulf %737, %727 : vector<3x2xf32>
    %739 = arith.addf %723, %738 : vector<3x2xf32>
    %740 = vector.broadcast %195 : f32 to vector<3x2xf32>
    %741 = arith.mulf %740, %727 : vector<3x2xf32>
    %742 = arith.addf %726, %741 : vector<3x2xf32>
    %c17_122 = arith.constant 17 : index
    %c0_123 = arith.constant 0 : index
    %743 = tpu.strided_load %arg10[%c17_122, %c0_123] {strides = array<i32: 3, 1>} : memref<36x2xf32, #tpu.memory_space<vmem>>, vector<3x2xf32>
    %744 = vector.broadcast %151 : f32 to vector<3x2xf32>
    %745 = arith.mulf %744, %743 : vector<3x2xf32>
    %746 = arith.addf %730, %745 : vector<3x2xf32>
    %747 = vector.broadcast %163 : f32 to vector<3x2xf32>
    %748 = arith.mulf %747, %743 : vector<3x2xf32>
    %749 = arith.addf %733, %748 : vector<3x2xf32>
    %750 = vector.broadcast %175 : f32 to vector<3x2xf32>
    %751 = arith.mulf %750, %743 : vector<3x2xf32>
    %752 = arith.addf %736, %751 : vector<3x2xf32>
    %753 = vector.broadcast %187 : f32 to vector<3x2xf32>
    %754 = arith.mulf %753, %743 : vector<3x2xf32>
    %755 = arith.addf %739, %754 : vector<3x2xf32>
    %756 = vector.broadcast %199 : f32 to vector<3x2xf32>
    %757 = arith.mulf %756, %743 : vector<3x2xf32>
    %758 = arith.addf %742, %757 : vector<3x2xf32>
    %c29_124 = arith.constant 29 : index
    %c0_125 = arith.constant 0 : index
    %759 = tpu.strided_load %arg10[%c29_124, %c0_125] {strides = array<i32: 3, 1>} : memref<36x2xf32, #tpu.memory_space<vmem>>, vector<3x2xf32>
    %760 = vector.broadcast %155 : f32 to vector<3x2xf32>
    %761 = arith.mulf %760, %759 : vector<3x2xf32>
    %762 = arith.addf %746, %761 : vector<3x2xf32>
    %763 = vector.broadcast %167 : f32 to vector<3x2xf32>
    %764 = arith.mulf %763, %759 : vector<3x2xf32>
    %765 = arith.addf %749, %764 : vector<3x2xf32>
    %766 = vector.broadcast %179 : f32 to vector<3x2xf32>
    %767 = arith.mulf %766, %759 : vector<3x2xf32>
    %768 = arith.addf %752, %767 : vector<3x2xf32>
    %769 = vector.broadcast %191 : f32 to vector<3x2xf32>
    %770 = arith.mulf %769, %759 : vector<3x2xf32>
    %771 = arith.addf %755, %770 : vector<3x2xf32>
    %772 = vector.broadcast %203 : f32 to vector<3x2xf32>
    %773 = arith.mulf %772, %759 : vector<3x2xf32>
    %774 = arith.addf %758, %773 : vector<3x2xf32>
    %775 = arith.maximumf %583, %762 : vector<3x2xf32>
    %776 = arith.maximumf %584, %765 : vector<3x2xf32>
    %777 = arith.maximumf %585, %768 : vector<3x2xf32>
    %778 = arith.maximumf %586, %771 : vector<3x2xf32>
    %779 = arith.maximumf %587, %774 : vector<3x2xf32>
    %780 = vector.broadcast %204 : f32 to vector<3x2xf32>
    %781 = arith.addf %775, %780 : vector<3x2xf32>
    %782 = vector.broadcast %205 : f32 to vector<3x2xf32>
    %783 = arith.addf %776, %782 : vector<3x2xf32>
    %784 = vector.broadcast %206 : f32 to vector<3x2xf32>
    %785 = arith.addf %777, %784 : vector<3x2xf32>
    %786 = vector.broadcast %207 : f32 to vector<3x2xf32>
    %787 = arith.addf %778, %786 : vector<3x2xf32>
    %788 = vector.broadcast %208 : f32 to vector<3x2xf32>
    %789 = arith.addf %779, %788 : vector<3x2xf32>
    %cst = arith.constant dense<0.000000e+00> : vector<2xf32>
    %790 = vector.multi_reduction <add>, %781, %cst [0] : vector<3x2xf32> to vector<2xf32>
    %791 = vector.shape_cast %790 : vector<2xf32> to vector<1x2xf32>
    %cst_126 = arith.constant 0.333333343 : f32
    %792 = vector.broadcast %cst_126 : f32 to vector<1x2xf32>
    %793 = arith.mulf %791, %792 : vector<1x2xf32>
    %cst_127 = arith.constant dense<0.000000e+00> : vector<2xf32>
    %794 = vector.multi_reduction <add>, %783, %cst_127 [0] : vector<3x2xf32> to vector<2xf32>
    %795 = vector.shape_cast %794 : vector<2xf32> to vector<1x2xf32>
    %cst_128 = arith.constant 0.333333343 : f32
    %796 = vector.broadcast %cst_128 : f32 to vector<1x2xf32>
    %797 = arith.mulf %795, %796 : vector<1x2xf32>
    %cst_129 = arith.constant dense<0.000000e+00> : vector<2xf32>
    %798 = vector.multi_reduction <add>, %785, %cst_129 [0] : vector<3x2xf32> to vector<2xf32>
    %799 = vector.shape_cast %798 : vector<2xf32> to vector<1x2xf32>
    %cst_130 = arith.constant 0.333333343 : f32
    %800 = vector.broadcast %cst_130 : f32 to vector<1x2xf32>
    %801 = arith.mulf %799, %800 : vector<1x2xf32>
    %cst_131 = arith.constant dense<0.000000e+00> : vector<2xf32>
    %802 = vector.multi_reduction <add>, %787, %cst_131 [0] : vector<3x2xf32> to vector<2xf32>
    %803 = vector.shape_cast %802 : vector<2xf32> to vector<1x2xf32>
    %cst_132 = arith.constant 0.333333343 : f32
    %804 = vector.broadcast %cst_132 : f32 to vector<1x2xf32>
    %805 = arith.mulf %803, %804 : vector<1x2xf32>
    %cst_133 = arith.constant dense<0.000000e+00> : vector<2xf32>
    %806 = vector.multi_reduction <add>, %789, %cst_133 [0] : vector<3x2xf32> to vector<2xf32>
    %807 = vector.shape_cast %806 : vector<2xf32> to vector<1x2xf32>
    %cst_134 = arith.constant 0.333333343 : f32
    %808 = vector.broadcast %cst_134 : f32 to vector<1x2xf32>
    %809 = arith.mulf %807, %808 : vector<1x2xf32>
    %c0_135 = arith.constant 0 : index
    %810 = memref.load %arg7[%c0_135] : memref<4xf32, #tpu.memory_space<smem>>
    %c0_136 = arith.constant 0 : index
    %811 = memref.load %arg6[%c0_136] : memref<20xf32, #tpu.memory_space<smem>>
    %812 = vector.broadcast %811 : f32 to vector<1x2xf32>
    %813 = arith.mulf %812, %793 : vector<1x2xf32>
    %814 = vector.broadcast %810 : f32 to vector<1x2xf32>
    %815 = arith.addf %814, %813 : vector<1x2xf32>
    %c1_137 = arith.constant 1 : index
    %816 = memref.load %arg6[%c1_137] : memref<20xf32, #tpu.memory_space<smem>>
    %817 = vector.broadcast %816 : f32 to vector<1x2xf32>
    %818 = arith.mulf %817, %797 : vector<1x2xf32>
    %819 = arith.addf %815, %818 : vector<1x2xf32>
    %c2_138 = arith.constant 2 : index
    %820 = memref.load %arg6[%c2_138] : memref<20xf32, #tpu.memory_space<smem>>
    %821 = vector.broadcast %820 : f32 to vector<1x2xf32>
    %822 = arith.mulf %821, %801 : vector<1x2xf32>
    %823 = arith.addf %819, %822 : vector<1x2xf32>
    %c3_139 = arith.constant 3 : index
    %824 = memref.load %arg6[%c3_139] : memref<20xf32, #tpu.memory_space<smem>>
    %825 = vector.broadcast %824 : f32 to vector<1x2xf32>
    %826 = arith.mulf %825, %805 : vector<1x2xf32>
    %827 = arith.addf %823, %826 : vector<1x2xf32>
    %c4_140 = arith.constant 4 : index
    %828 = memref.load %arg6[%c4_140] : memref<20xf32, #tpu.memory_space<smem>>
    %829 = vector.broadcast %828 : f32 to vector<1x2xf32>
    %830 = arith.mulf %829, %809 : vector<1x2xf32>
    %831 = arith.addf %827, %830 : vector<1x2xf32>
    %c1_141 = arith.constant 1 : index
    %832 = memref.load %arg7[%c1_141] : memref<4xf32, #tpu.memory_space<smem>>
    %c5_142 = arith.constant 5 : index
    %833 = memref.load %arg6[%c5_142] : memref<20xf32, #tpu.memory_space<smem>>
    %834 = vector.broadcast %833 : f32 to vector<1x2xf32>
    %835 = arith.mulf %834, %793 : vector<1x2xf32>
    %836 = vector.broadcast %832 : f32 to vector<1x2xf32>
    %837 = arith.addf %836, %835 : vector<1x2xf32>
    %c6_143 = arith.constant 6 : index
    %838 = memref.load %arg6[%c6_143] : memref<20xf32, #tpu.memory_space<smem>>
    %839 = vector.broadcast %838 : f32 to vector<1x2xf32>
    %840 = arith.mulf %839, %797 : vector<1x2xf32>
    %841 = arith.addf %837, %840 : vector<1x2xf32>
    %c7_144 = arith.constant 7 : index
    %842 = memref.load %arg6[%c7_144] : memref<20xf32, #tpu.memory_space<smem>>
    %843 = vector.broadcast %842 : f32 to vector<1x2xf32>
    %844 = arith.mulf %843, %801 : vector<1x2xf32>
    %845 = arith.addf %841, %844 : vector<1x2xf32>
    %c8_145 = arith.constant 8 : index
    %846 = memref.load %arg6[%c8_145] : memref<20xf32, #tpu.memory_space<smem>>
    %847 = vector.broadcast %846 : f32 to vector<1x2xf32>
    %848 = arith.mulf %847, %805 : vector<1x2xf32>
    %849 = arith.addf %845, %848 : vector<1x2xf32>
    %c9_146 = arith.constant 9 : index
    %850 = memref.load %arg6[%c9_146] : memref<20xf32, #tpu.memory_space<smem>>
    %851 = vector.broadcast %850 : f32 to vector<1x2xf32>
    %852 = arith.mulf %851, %809 : vector<1x2xf32>
    %853 = arith.addf %849, %852 : vector<1x2xf32>
    %c2_147 = arith.constant 2 : index
    %854 = memref.load %arg7[%c2_147] : memref<4xf32, #tpu.memory_space<smem>>
    %c10_148 = arith.constant 10 : index
    %855 = memref.load %arg6[%c10_148] : memref<20xf32, #tpu.memory_space<smem>>
    %856 = vector.broadcast %855 : f32 to vector<1x2xf32>
    %857 = arith.mulf %856, %793 : vector<1x2xf32>
    %858 = vector.broadcast %854 : f32 to vector<1x2xf32>
    %859 = arith.addf %858, %857 : vector<1x2xf32>
    %c11_149 = arith.constant 11 : index
    %860 = memref.load %arg6[%c11_149] : memref<20xf32, #tpu.memory_space<smem>>
    %861 = vector.broadcast %860 : f32 to vector<1x2xf32>
    %862 = arith.mulf %861, %797 : vector<1x2xf32>
    %863 = arith.addf %859, %862 : vector<1x2xf32>
    %c12_150 = arith.constant 12 : index
    %864 = memref.load %arg6[%c12_150] : memref<20xf32, #tpu.memory_space<smem>>
    %865 = vector.broadcast %864 : f32 to vector<1x2xf32>
    %866 = arith.mulf %865, %801 : vector<1x2xf32>
    %867 = arith.addf %863, %866 : vector<1x2xf32>
    %c13_151 = arith.constant 13 : index
    %868 = memref.load %arg6[%c13_151] : memref<20xf32, #tpu.memory_space<smem>>
    %869 = vector.broadcast %868 : f32 to vector<1x2xf32>
    %870 = arith.mulf %869, %805 : vector<1x2xf32>
    %871 = arith.addf %867, %870 : vector<1x2xf32>
    %c14_152 = arith.constant 14 : index
    %872 = memref.load %arg6[%c14_152] : memref<20xf32, #tpu.memory_space<smem>>
    %873 = vector.broadcast %872 : f32 to vector<1x2xf32>
    %874 = arith.mulf %873, %809 : vector<1x2xf32>
    %875 = arith.addf %871, %874 : vector<1x2xf32>
    %c3_153 = arith.constant 3 : index
    %876 = memref.load %arg7[%c3_153] : memref<4xf32, #tpu.memory_space<smem>>
    %c15_154 = arith.constant 15 : index
    %877 = memref.load %arg6[%c15_154] : memref<20xf32, #tpu.memory_space<smem>>
    %878 = vector.broadcast %877 : f32 to vector<1x2xf32>
    %879 = arith.mulf %878, %793 : vector<1x2xf32>
    %880 = vector.broadcast %876 : f32 to vector<1x2xf32>
    %881 = arith.addf %880, %879 : vector<1x2xf32>
    %c16_155 = arith.constant 16 : index
    %882 = memref.load %arg6[%c16_155] : memref<20xf32, #tpu.memory_space<smem>>
    %883 = vector.broadcast %882 : f32 to vector<1x2xf32>
    %884 = arith.mulf %883, %797 : vector<1x2xf32>
    %885 = arith.addf %881, %884 : vector<1x2xf32>
    %c17_156 = arith.constant 17 : index
    %886 = memref.load %arg6[%c17_156] : memref<20xf32, #tpu.memory_space<smem>>
    %887 = vector.broadcast %886 : f32 to vector<1x2xf32>
    %888 = arith.mulf %887, %801 : vector<1x2xf32>
    %889 = arith.addf %885, %888 : vector<1x2xf32>
    %c18_157 = arith.constant 18 : index
    %890 = memref.load %arg6[%c18_157] : memref<20xf32, #tpu.memory_space<smem>>
    %891 = vector.broadcast %890 : f32 to vector<1x2xf32>
    %892 = arith.mulf %891, %805 : vector<1x2xf32>
    %893 = arith.addf %889, %892 : vector<1x2xf32>
    %c19_158 = arith.constant 19 : index
    %894 = memref.load %arg6[%c19_158] : memref<20xf32, #tpu.memory_space<smem>>
    %895 = vector.broadcast %894 : f32 to vector<1x2xf32>
    %896 = arith.mulf %895, %809 : vector<1x2xf32>
    %897 = arith.addf %893, %896 : vector<1x2xf32>
    %898 = arith.maximumf %831, %853 : vector<1x2xf32>
    %899 = arith.maximumf %898, %875 : vector<1x2xf32>
    %900 = arith.maximumf %899, %897 : vector<1x2xf32>
    %901 = arith.subf %831, %900 : vector<1x2xf32>
    %902 = math.exp %901 : vector<1x2xf32>
    %903 = arith.subf %853, %900 : vector<1x2xf32>
    %904 = math.exp %903 : vector<1x2xf32>
    %905 = arith.subf %875, %900 : vector<1x2xf32>
    %906 = math.exp %905 : vector<1x2xf32>
    %907 = arith.subf %897, %900 : vector<1x2xf32>
    %908 = math.exp %907 : vector<1x2xf32>
    %909 = arith.addf %902, %904 : vector<1x2xf32>
    %910 = arith.addf %909, %906 : vector<1x2xf32>
    %911 = arith.addf %910, %908 : vector<1x2xf32>
    %cst_159 = arith.constant 1.000000e+00 : f32
    %912 = vector.broadcast %cst_159 : f32 to vector<1x2xf32>
    %913 = arith.divf %912, %911 : vector<1x2xf32>
    %914 = arith.mulf %902, %913 : vector<1x2xf32>
    %915 = arith.mulf %904, %913 : vector<1x2xf32>
    %916 = arith.mulf %906, %913 : vector<1x2xf32>
    %917 = arith.mulf %908, %913 : vector<1x2xf32>
    %918 = tpu.concatenate %914, %915, %916, %917 in 0 : vector<1x2xf32>, vector<1x2xf32>, vector<1x2xf32>, vector<1x2xf32> -> vector<4x2xf32>
    %c0_160 = arith.constant 0 : index
    %c0_161 = arith.constant 0 : index
    %919 = vector.load %arg8[%c0_160, %c0_161] : memref<4x2xf32, #tpu.memory_space<vmem>>, vector<4x2xf32>
    tpu.vector_store %arg8[%c0_160, %c0_161], %918 {strides = array<i32>} : memref<4x2xf32, #tpu.memory_space<vmem>>, vector<4x2xf32>,
    return
  }
  func.func @transform_0(%arg0: i32) -> (i32, i32) {
    %c0_i32 = arith.constant 0 : i32
    %c0_i32_0 = arith.constant 0 : i32
    return %arg0, %c0_i32 : i32, i32
  }
  func.func @transform_1(%arg0: i32) -> i32 {
    %c0_i32 = arith.constant 0 : i32
    %c0_i32_0 = arith.constant 0 : i32
    return %c0_i32 : i32
  }
  func.func @transform_2(%arg0: i32) -> i32 {
    %c0_i32 = arith.constant 0 : i32
    %c0_i32_0 = arith.constant 0 : i32
    return %c0_i32 : i32
  }
  func.func @transform_3(%arg0: i32) -> i32 {
    %c0_i32 = arith.constant 0 : i32
    %c0_i32_0 = arith.constant 0 : i32
    return %c0_i32 : i32
  }
  func.func @transform_4(%arg0: i32) -> i32 {
    %c0_i32 = arith.constant 0 : i32
    %c0_i32_0 = arith.constant 0 : i32
    return %c0_i32 : i32
  }
  func.func @transform_5(%arg0: i32) -> i32 {
    %c0_i32 = arith.constant 0 : i32
    %c0_i32_0 = arith.constant 0 : i32
    return %c0_i32 : i32
  }
  func.func @transform_6(%arg0: i32) -> i32 {
    %c0_i32 = arith.constant 0 : i32
    %c0_i32_0 = arith.constant 0 : i32
    return %c0_i32 : i32
  }
  func.func @transform_7(%arg0: i32) -> (i32, i32) {
    %c0_i32 = arith.constant 0 : i32
    %c0_i32_0 = arith.constant 0 : i32
    return %c0_i32, %arg0 : i32, i32
  }
}

</mosaic_0001>

<llo_original>
// kernel: tpu_custom_call.1
$region0: #{tpu_custom_call.1}
  #allocation0 [shape = 'u32[]', space=smem, size = 0x4, offset = 0x4, fixed_abs, tag = 'smem constant byte address 0x4 - core index']
  #allocation1 [shape = 'u32[144,128]{1,0:T(1,128)}', space=vmem, size = 0x12000, scoped, tag = 'internal scratch']
  #allocation2 [shape = 'f32[40,2]{1,0:T(8,128)}', space=vmem, size = 0x5000, scoped, tag = 'scratch operand']
  #allocation3 [shape = 'f32[36,2]{1,0:T(8,128)}', space=vmem, size = 0x5000, scoped, tag = 'scratch operand']
  %s0 = inlined_call_operand.hbm [shape: f32[2,40], index: 0, kind: input, shape index: {}]
  %s1 = inlined_call_operand.vmem [shape: f32[12], index: 1, kind: input, shape index: {}]
  %s2 = inlined_call_operand.vmem [shape: f32[3], index: 2, kind: input, shape index: {}]
  %s3 = inlined_call_operand.vmem [shape: f32[60], index: 3, kind: input, shape index: {}]
  %s4 = inlined_call_operand.vmem [shape: f32[5], index: 4, kind: input, shape index: {}]
  %s5 = inlined_call_operand.vmem [shape: f32[20], index: 5, kind: input, shape index: {}]
  %s6 = inlined_call_operand.vmem [shape: f32[4], index: 6, kind: input, shape index: {}]
  %s7 = inlined_call_operand.vmem [shape: f32[4,2], index: 7, kind: output, shape index: {}]
  %s8 = sld [smem:[#allocation0]]
  $region66: #{tpu_custom_call.1} parent=0
    _
  %s10 = ssub.s32 1, %s8
  %s11 = scalar_select 0, %s10, %s8
  $region1: #{tpu_custom_call.1} parent=0
    #allocation4 [shape = 'u8[1024]{0}', space=vmem, size = 0x400, scoped, tag = 'input window, operand 0, single buffered']
    #allocation5 [shape = 's32[1]{0}', space=sflag, size = 0x4, scoped, tag = 'scoped memory for tpu_custom_call.1']
    #allocation6 [shape = 's32[1]{0}', space=sflag, size = 0x4, scoped, tag = 'scoped memory for tpu_custom_call.1']
    #allocation7 [shape = 'u8[512]{0}', space=smem, size = 0x200, scoped, tag = 'input window, operand 1, single buffered']
    #allocation8 [shape = 'u8[512]{0}', space=smem, size = 0x200, scoped, tag = 'input window, operand 2, single buffered']
    #allocation9 [shape = 's32[1]{0}', space=sflag, size = 0x4, scoped, tag = 'scoped memory for tpu_custom_call.1']
    #allocation10 [shape = 'u8[512]{0}', space=smem, size = 0x200, scoped, tag = 'input window, operand 3, single buffered']
    #allocation11 [shape = 'u8[512]{0}', space=smem, size = 0x200, scoped, tag = 'input window, operand 4, single buffered']
    #allocation12 [shape = 's32[1]{0}', space=sflag, size = 0x4, scoped, tag = 'scoped memory for tpu_custom_call.1']
    #allocation13 [shape = 'u8[512]{0}', space=smem, size = 0x200, scoped, tag = 'input window, operand 5, single buffered']
    #allocation14 [shape = 'u8[512]{0}', space=smem, size = 0x200, scoped, tag = 'input window, operand 6, single buffered']
    #allocation15 [shape = 's32[1]{0}', space=sflag, size = 0x4, scoped, tag = 'scoped memory for tpu_custom_call.1']
    %12 = vsyncpa [#allocation5], 0
    %13 = vsyncpa [#allocation6], 0
    %14 = vsyncpa [#allocation9], 0
    %15 = vsyncpa [#allocation12], 0
    %16 = vsyncpa [#allocation15], 0
    // Predicated region
    $region2: #{tpu_custom_call.1} parent=1 // pred_check
      _
    $region3: #{tpu_custom_call.1} parent=1 // pred_check_branch
      %18 = sbr.rel (0) target = $region5
    $region4: #{tpu_custom_call.1} parent=1 // pred_region
      %s20 = ssub.s32 32, 32
      %21 = vsyncadd [#allocation5], %s20
      %s23 = sshll.u32 [#allocation4], 4
      %s24 = int_to_ptr.vmem [resolvable:$true] %s23
      %26 = dma.hbm_to_vmem [thread:$0]  %s0, 32, %s24, [#allocation5]
    $region5: #{tpu_custom_call.1} parent=1 // pred_fallthru
      _
    // Predicated region
    $region6: #{tpu_custom_call.1} parent=1 // pred_check
      _
    $region7: #{tpu_custom_call.1} parent=1 // pred_check_branch
      %28 = sbr.rel (0) target = $region9
    $region8: #{tpu_custom_call.1} parent=1 // pred_region
      %s30 = ssub.s32 16, 16
      %31 = vsyncadd [#allocation6], %s30
      %s33 = sshll.u32 %s1, 4
      %s34 = int_to_ptr.vmem [resolvable:$true] %s33
      %36 = dma.vmem_to_smem %s34, 16, [#allocation7], [#allocation6]
    $region9: #{tpu_custom_call.1} parent=1 // pred_fallthru
      _
    // Predicated region
    $region10: #{tpu_custom_call.1} parent=1 // pred_check
      _
    $region11: #{tpu_custom_call.1} parent=1 // pred_check_branch
      %38 = sbr.rel (0) target = $region13
    $region12: #{tpu_custom_call.1} parent=1 // pred_region
      %s40 = ssub.s32 16, 16
      %41 = vsyncadd [#allocation9], %s40
      %s43 = sshll.u32 %s2, 4
      %s44 = int_to_ptr.vmem [resolvable:$true] %s43
      %46 = dma.vmem_to_smem %s44, 16, [#allocation8], [#allocation9]
    $region13: #{tpu_custom_call.1} parent=1 // pred_fallthru
      _
    // Predicated region
    $region14: #{tpu_custom_call.1} parent=1 // pred_check
      _
    $region15: #{tpu_custom_call.1} parent=1 // pred_check_branch
      %48 = sbr.rel (0) target = $region17
    $region16: #{tpu_custom_call.1} parent=1 // pred_region
      %s50 = ssub.s32 16, 16
      %51 = vsyncadd [#allocation9], %s50
      %s53 = sshll.u32 %s3, 4
      %s54 = int_to_ptr.vmem [resolvable:$true] %s53
      %56 = dma.vmem_to_smem %s54, 16, [#allocation10], [#allocation9]
    $region17: #{tpu_custom_call.1} parent=1 // pred_fallthru
      _
    // Predicated region
    $region18: #{tpu_custom_call.1} parent=1 // pred_check
      _
    $region19: #{tpu_custom_call.1} parent=1 // pred_check_branch
      %58 = sbr.rel (0) target = $region21
    $region20: #{tpu_custom_call.1} parent=1 // pred_region
      %s60 = ssub.s32 16, 16
      %61 = vsyncadd [#allocation12], %s60
      %s63 = sshll.u32 %s4, 4
      %s64 = int_to_ptr.vmem [resolvable:$true] %s63
      %66 = dma.vmem_to_smem %s64, 16, [#allocation11], [#allocation12]
    $region21: #{tpu_custom_call.1} parent=1 // pred_fallthru
      _
    // Predicated region
    $region22: #{tpu_custom_call.1} parent=1 // pred_check
      _
    $region23: #{tpu_custom_call.1} parent=1 // pred_check_branch
      %68 = sbr.rel (0) target = $region25
    $region24: #{tpu_custom_call.1} parent=1 // pred_region
      %s70 = ssub.s32 16, 16
      %71 = vsyncadd [#allocation12], %s70
      %s73 = sshll.u32 %s5, 4
      %s74 = int_to_ptr.vmem [resolvable:$true] %s73
      %76 = dma.vmem_to_smem %s74, 16, [#allocation13], [#allocation12]
    $region25: #{tpu_custom_call.1} parent=1 // pred_fallthru
      _
    // Predicated region
    $region26: #{tpu_custom_call.1} parent=1 // pred_check
      _
    $region27: #{tpu_custom_call.1} parent=1 // pred_check_branch
      %78 = sbr.rel (0) target = $region29
    $region28: #{tpu_custom_call.1} parent=1 // pred_region
      %s80 = ssub.s32 16, 16
      %81 = vsyncadd [#allocation15], %s80
      %s83 = sshll.u32 %s6, 4
      %s84 = int_to_ptr.vmem [resolvable:$true] %s83
      %86 = dma.vmem_to_smem %s84, 16, [#allocation14], [#allocation15]
    $region29: #{tpu_custom_call.1} parent=1 // pred_fallthru
      _
    // Predicated region
    $region30: #{tpu_custom_call.1} parent=1 // pred_check
      _
    $region31: #{tpu_custom_call.1} parent=1 // pred_check_branch
      %88 = sbr.rel (0) target = $region33
    $region32: #{tpu_custom_call.1} parent=1 // pred_region
      %89 = dma.done [#allocation5], 32
    $region33: #{tpu_custom_call.1} parent=1 // pred_fallthru
      _
    // Predicated region
    $region34: #{tpu_custom_call.1} parent=1 // pred_check
      _
    $region35: #{tpu_custom_call.1} parent=1 // pred_check_branch
      %91 = sbr.rel (0) target = $region37
    $region36: #{tpu_custom_call.1} parent=1 // pred_region
      %92 = dma.done [#allocation6], 16
    $region37: #{tpu_custom_call.1} parent=1 // pred_fallthru
      _
    // Predicated region
    $region38: #{tpu_custom_call.1} parent=1 // pred_check
      _
    $region39: #{tpu_custom_call.1} parent=1 // pred_check_branch
      %94 = sbr.rel (0) target = $region41
    $region40: #{tpu_custom_call.1} parent=1 // pred_region
      %95 = dma.done [#allocation9], 16
    $region41: #{tpu_custom_call.1} parent=1 // pred_fallthru
      _
    // Predicated region
    $region42: #{tpu_custom_call.1} parent=1 // pred_check
      _
    $region43: #{tpu_custom_call.1} parent=1 // pred_check_branch
      %97 = sbr.rel (0) target = $region45
    $region44: #{tpu_custom_call.1} parent=1 // pred_region
      %98 = dma.done [#allocation9], 16
    $region45: #{tpu_custom_call.1} parent=1 // pred_fallthru
      _
    // Predicated region
    $region46: #{tpu_custom_call.1} parent=1 // pred_check
      _
    $region47: #{tpu_custom_call.1} parent=1 // pred_check_branch
      %100 = sbr.rel (0) target = $region49
    $region48: #{tpu_custom_call.1} parent=1 // pred_region
      %101 = dma.done [#allocation12], 16
    $region49: #{tpu_custom_call.1} parent=1 // pred_fallthru
      _
    // Predicated region
    $region50: #{tpu_custom_call.1} parent=1 // pred_check
      _
    $region51: #{tpu_custom_call.1} parent=1 // pred_check_branch
      %103 = sbr.rel (0) target = $region53
    $region52: #{tpu_custom_call.1} parent=1 // pred_region
      %104 = dma.done [#allocation12], 16
    $region53: #{tpu_custom_call.1} parent=1 // pred_fallthru
      _
    // Predicated region
    $region54: #{tpu_custom_call.1} parent=1 // pred_check
      _
    $region55: #{tpu_custom_call.1} parent=1 // pred_check_branch
      %106 = sbr.rel (0) target = $region57
    $region56: #{tpu_custom_call.1} parent=1 // pred_region
      %107 = dma.done [#allocation15], 16
    $region57: #{tpu_custom_call.1} parent=1 // pred_fallthru
      _
    %108 = sfence
    %v109 = vld [vmem:[#allocation4] sm:$0x3]
    %110 = vxpose.xlu0.b32.start [1/16] %v109, 128
    %111 = vxpose.xlu0.b32.cont [2/16] 0.0, 128
    %112 = vxpose.xlu0.b32.cont [3/16] 0.0, 128
    %113 = vxpose.xlu0.b32.cont [4/16] 0.0, 128
    %114 = vxpose.xlu0.b32.cont [5/16] 0.0, 128
    %115 = vxpose.xlu0.b32.cont [6/16] 0.0, 128
    %116 = vxpose.xlu0.b32.cont [7/16] 0.0, 128
    %117 = vxpose.xlu0.b32.cont [8/16] 0.0, 128
    %118 = vxpose.xlu0.b32.cont [9/16] 0.0, 128
    %119 = vxpose.xlu0.b32.cont [10/16] 0.0, 128
    %120 = vxpose.xlu0.b32.cont [11/16] 0.0, 128
    %121 = vxpose.xlu0.b32.cont [12/16] 0.0, 128
    %122 = vxpose.xlu0.b32.cont [13/16] 0.0, 128
    %123 = vxpose.xlu0.b32.cont [14/16] 0.0, 128
    %124 = vxpose.xlu0.b32.cont [15/16] 0.0, 128
    %125 = vxpose.xlu0.b32.end [16/16] 0.0, 128
    %v126 = vpop.trf.xlu0
    %v127 = vpop.trf.xlu0
    %v128 = vpop.trf.xlu0
    %v129 = vpop.trf.xlu0
    %v130 = vpop.trf.xlu0
    %v131 = vpop.trf.xlu0
    %v132 = vpop.trf.xlu0
    %v133 = vpop.trf.xlu0
    %v134 = vpop.trf.xlu0
    %v135 = vpop.trf.xlu0
    %v136 = vpop.trf.xlu0
    %v137 = vpop.trf.xlu0
    %v138 = vpop.trf.xlu0
    %v139 = vpop.trf.xlu0
    %v140 = vpop.trf.xlu0
    %v141 = vpop.trf.xlu0
    %vm142 = vcmask 15360
    %143 = vst.msk [vmem:[#allocation2] sm:$0xff] %vm142, %v126
    %144 = vst.msk [vmem:[#allocation2 + $0x8] sm:$0xff] %vm142, %v127
    %145 = vst.msk [vmem:[#allocation2 + $0x10] sm:$0xff] %vm142, %v128
    %146 = vst.msk [vmem:[#allocation2 + $0x18] sm:$0xff] %vm142, %v129
    %147 = vst.msk [vmem:[#allocation2 + $0x20] sm:$0xff] %vm142, %v130
    %s148 = sld [smem:[#allocation7]]
    %s149 = sld [smem:[#allocation7 + $0x1]]
    %s150 = sld [smem:[#allocation7 + $0x2]]
    %s151 = sld [smem:[#allocation7 + $0x3]]
    %s152 = sld [smem:[#allocation7 + $0x4]]
    %s153 = sld [smem:[#allocation7 + $0x5]]
    %s154 = sld [smem:[#allocation7 + $0x6]]
    %s155 = sld [smem:[#allocation7 + $0x7]]
    %s156 = sld [smem:[#allocation7 + $0x8]]
    %s157 = sld [smem:[#allocation7 + $0x9]]
    %s158 = sld [smem:[#allocation7 + $0xa]]
    %s159 = sld [smem:[#allocation7 + $0xb]]
    %s160 = sld [smem:[#allocation8]]
    %s161 = sld [smem:[#allocation8 + $0x1]]
    %s162 = sld [smem:[#allocation8 + $0x2]]
    %v163 = vld [vmem:[#allocation2] ss:$3 sm:$0xff]
    %s164 = scalar_lea.vmem [#allocation2], 24
    %v165 = vld [vmem:[%s164] ss:$3 sm:$0xf]
    %v166 = vstv %s148
    %v167 = vmul.f32 %v166, %v163
    %v168 = vmul.f32 %v166, %v165
    %v169 = vstv %s152
    %v170 = vmul.f32 %v169, %v163
    %v171 = vmul.f32 %v169, %v165
    %v172 = vstv %s156
    %v173 = vmul.f32 %v172, %v163
    %v174 = vmul.f32 %v172, %v165
    %s175 = scalar_lea.vmem [#allocation2], 1
    %v176 = vld [vmem:[%s175] ss:$3 sm:$0xff]
    %s177 = scalar_lea.vmem [#allocation2], 25
    %v178 = vld [vmem:[%s177] ss:$3 sm:$0xf]
    %v179 = vstv %s149
    %v180 = vmul.f32 %v179, %v176
    %v181 = vmul.f32 %v179, %v178
    %v182 = vadd.f32 %v167, %v180
    %v183 = vadd.f32 %v168, %v181
    %v184 = vstv %s153
    %v185 = vmul.f32 %v184, %v176
    %v186 = vmul.f32 %v184, %v178
    %v187 = vadd.f32 %v170, %v185
    %v188 = vadd.f32 %v171, %v186
    %v189 = vstv %s157
    %v190 = vmul.f32 %v189, %v176
    %v191 = vmul.f32 %v189, %v178
    %v192 = vadd.f32 %v173, %v190
    %v193 = vadd.f32 %v174, %v191
    %s194 = scalar_lea.vmem [#allocation2], 2
    %v195 = vld [vmem:[%s194] ss:$3 sm:$0xff]
    %s196 = scalar_lea.vmem [#allocation2], 26
    %v197 = vld [vmem:[%s196] ss:$3 sm:$0xf]
    %v198 = vstv %s150
    %v199 = vmul.f32 %v198, %v195
    %v200 = vmul.f32 %v198, %v197
    %v201 = vadd.f32 %v182, %v199
    %v202 = vadd.f32 %v183, %v200
    %v203 = vstv %s154
    %v204 = vmul.f32 %v203, %v195
    %v205 = vmul.f32 %v203, %v197
    %v206 = vadd.f32 %v187, %v204
    %v207 = vadd.f32 %v188, %v205
    %v208 = vstv %s158
    %v209 = vmul.f32 %v208, %v195
    %v210 = vmul.f32 %v208, %v197
    %v211 = vadd.f32 %v192, %v209
    %v212 = vadd.f32 %v193, %v210
    %s213 = scalar_lea.vmem [#allocation2], 3
    %v214 = vld [vmem:[%s213] ss:$3 sm:$0xff]
    %s215 = scalar_lea.vmem [#allocation2], 27
    %v216 = vld [vmem:[%s215] ss:$3 sm:$0xf]
    %v217 = vstv %s151
    %v218 = vmul.f32 %v217, %v214
    %v219 = vmul.f32 %v217, %v216
    %v220 = vadd.f32 %v201, %v218
    %v221 = vadd.f32 %v202, %v219
    %v222 = vstv %s155
    %v223 = vmul.f32 %v222, %v214
    %v224 = vmul.f32 %v222, %v216
    %v225 = vadd.f32 %v206, %v223
    %v226 = vadd.f32 %v207, %v224
    %v227 = vstv %s159
    %v228 = vmul.f32 %v227, %v214
    %v229 = vmul.f32 %v227, %v216
    %v230 = vadd.f32 %v211, %v228
    %v231 = vadd.f32 %v212, %v229
    %v232 = vmul.f32 %v166, %v176
    %v233 = vmul.f32 %v166, %v178
    %v234 = vmul.f32 %v169, %v176
    %v235 = vmul.f32 %v169, %v178
    %v236 = vmul.f32 %v172, %v176
    %v237 = vmul.f32 %v172, %v178
    %v238 = vmul.f32 %v179, %v195
    %v239 = vmul.f32 %v179, %v197
    %v240 = vadd.f32 %v232, %v238
    %v241 = vadd.f32 %v233, %v239
    %v242 = vmul.f32 %v184, %v195
    %v243 = vmul.f32 %v184, %v197
    %v244 = vadd.f32 %v234, %v242
    %v245 = vadd.f32 %v235, %v243
    %v246 = vmul.f32 %v189, %v195
    %v247 = vmul.f32 %v189, %v197
    %v248 = vadd.f32 %v236, %v246
    %v249 = vadd.f32 %v237, %v247
    %v250 = vmul.f32 %v198, %v214
    %v251 = vmul.f32 %v198, %v216
    %v252 = vadd.f32 %v240, %v250
    %v253 = vadd.f32 %v241, %v251
    %v254 = vmul.f32 %v203, %v214
    %v255 = vmul.f32 %v203, %v216
    %v256 = vadd.f32 %v244, %v254
    %v257 = vadd.f32 %v245, %v255
    %v258 = vmul.f32 %v208, %v214
    %v259 = vmul.f32 %v208, %v216
    %v260 = vadd.f32 %v248, %v258
    %v261 = vadd.f32 %v249, %v259
    %s262 = scalar_lea.vmem [#allocation2], 4
    %v263 = vld [vmem:[%s262] ss:$3 sm:$0xff]
    %s264 = scalar_lea.vmem [#allocation2], 28
    %v265 = vld [vmem:[%s264] ss:$3 sm:$0xf]
    %v266 = vmul.f32 %v217, %v263
    %v267 = vmul.f32 %v217, %v265
    %v268 = vadd.f32 %v252, %v266
    %v269 = vadd.f32 %v253, %v267
    %v270 = vmul.f32 %v222, %v263
    %v271 = vmul.f32 %v222, %v265
    %v272 = vadd.f32 %v256, %v270
    %v273 = vadd.f32 %v257, %v271
    %v274 = vmul.f32 %v227, %v263
    %v275 = vmul.f32 %v227, %v265
    %v276 = vadd.f32 %v260, %v274
    %v277 = vadd.f32 %v261, %v275
    %v278 = vmax.f32 %v220, %v268
    %v279 = vmax.f32 %v221, %v269
    %v280 = vmax.f32 %v225, %v272
    %v281 = vmax.f32 %v226, %v273
    %v282 = vmax.f32 %v230, %v276
    %v283 = vmax.f32 %v231, %v277
    %v284 = vmul.f32 %v166, %v195
    %v285 = vmul.f32 %v166, %v197
    %v286 = vmul.f32 %v169, %v195
    %v287 = vmul.f32 %v169, %v197
    %v288 = vmul.f32 %v172, %v195
    %v289 = vmul.f32 %v172, %v197
    %v290 = vmul.f32 %v179, %v214
    %v291 = vmul.f32 %v179, %v216
    %v292 = vadd.f32 %v284, %v290
    %v293 = vadd.f32 %v285, %v291
    %v294 = vmul.f32 %v184, %v214
    %v295 = vmul.f32 %v184, %v216
    %v296 = vadd.f32 %v286, %v294
    %v297 = vadd.f32 %v287, %v295
    %v298 = vmul.f32 %v189, %v214
    %v299 = vmul.f32 %v189, %v216
    %v300 = vadd.f32 %v288, %v298
    %v301 = vadd.f32 %v289, %v299
    %v302 = vmul.f32 %v198, %v263
    %v303 = vmul.f32 %v198, %v265
    %v304 = vadd.f32 %v292, %v302
    %v305 = vadd.f32 %v293, %v303
    %v306 = vmul.f32 %v203, %v263
    %v307 = vmul.f32 %v203, %v265
    %v308 = vadd.f32 %v296, %v306
    %v309 = vadd.f32 %v297, %v307
    %v310 = vmul.f32 %v208, %v263
    %v311 = vmul.f32 %v208, %v265
    %v312 = vadd.f32 %v300, %v310
    %v313 = vadd.f32 %v301, %v311
    %s314 = scalar_lea.vmem [#allocation2], 5
    %v315 = vld [vmem:[%s314] ss:$3 sm:$0xff]
    %s316 = scalar_lea.vmem [#allocation2], 29
    %v317 = vld [vmem:[%s316] ss:$3 sm:$0xf]
    %v318 = vmul.f32 %v217, %v315
    %v319 = vmul.f32 %v217, %v317
    %v320 = vadd.f32 %v304, %v318
    %v321 = vadd.f32 %v305, %v319
    %v322 = vmul.f32 %v222, %v315
    %v323 = vmul.f32 %v222, %v317
    %v324 = vadd.f32 %v308, %v322
    %v325 = vadd.f32 %v309, %v323
    %v326 = vmul.f32 %v227, %v315
    %v327 = vmul.f32 %v227, %v317
    %v328 = vadd.f32 %v312, %v326
    %v329 = vadd.f32 %v313, %v327
    %v330 = vmax.f32 %v278, %v320
    %v331 = vmax.f32 %v279, %v321
    %v332 = vmax.f32 %v280, %v324
    %v333 = vmax.f32 %v281, %v325
    %v334 = vmax.f32 %v282, %v328
    %v335 = vmax.f32 %v283, %v329
    %v336 = vstv %s160
    %v337 = vadd.f32 %v330, %v336
    %v338 = vadd.f32 %v331, %v336
    %339 = vst.msk [vmem:[#allocation3] sm:$0xff] %vm142, %v337
    %vm340 = vcmask 11264
    %341 = vst.msk [vmem:[#allocation3 + $0x8] sm:$0xf] %vm340, %v338
    %v342 = vstv %s161
    %v343 = vadd.f32 %v332, %v342
    %v344 = vadd.f32 %v333, %v342
    %345 = vst.msk [vmem:[#allocation3 + $0xc] sm:$0xff] %vm142, %v343
    %346 = vst.msk [vmem:[#allocation3 + $0x14] sm:$0xf] %vm340, %v344
    %v347 = vstv %s162
    %v348 = vadd.f32 %v334, %v347
    %v349 = vadd.f32 %v335, %v347
    %350 = vst.msk [vmem:[#allocation3 + $0x18] sm:$0xff] %vm142, %v348
    %351 = vst.msk [vmem:[#allocation3 + $0x20] sm:$0xf] %vm340, %v349
    %s352 = sld [smem:[#allocation10]]
    %s353 = sld [smem:[#allocation10 + $0x1]]
    %s354 = sld [smem:[#allocation10 + $0x2]]
    %s355 = sld [smem:[#allocation10 + $0x3]]
    %s356 = sld [smem:[#allocation10 + $0x4]]
    %s357 = sld [smem:[#allocation10 + $0x5]]
    %s358 = sld [smem:[#allocation10 + $0x6]]
    %s359 = sld [smem:[#allocation10 + $0x7]]
    %s360 = sld [smem:[#allocation10 + $0x8]]
    %s361 = sld [smem:[#allocation10 + $0x9]]
    %s362 = sld [smem:[#allocation10 + $0xa]]
    %s363 = sld [smem:[#allocation10 + $0xb]]
    %s364 = sld [smem:[#allocation10 + $0xc]]
    %s365 = sld [smem:[#allocation10 + $0xd]]
    %s366 = sld [smem:[#allocation10 + $0xe]]
    %s367 = sld [smem:[#allocation10 + $0xf]]
    %s368 = sld [smem:[#allocation10 + $0x10]]
    %s369 = sld [smem:[#allocation10 + $0x11]]
    %s370 = sld [smem:[#allocation10 + $0x12]]
    %s371 = sld [smem:[#allocation10 + $0x13]]
    %s372 = sld [smem:[#allocation10 + $0x14]]
    %s373 = sld [smem:[#allocation10 + $0x15]]
    %s374 = sld [smem:[#allocation10 + $0x16]]
    %s375 = sld [smem:[#allocation10 + $0x17]]
    %s376 = sld [smem:[#allocation10 + $0x18]]
    %s377 = sld [smem:[#allocation10 + $0x19]]
    %s378 = sld [smem:[#allocation10 + $0x1a]]
    %s379 = sld [smem:[#allocation10 + $0x1b]]
    %s380 = sld [smem:[#allocation10 + $0x1c]]
    %s381 = sld [smem:[#allocation10 + $0x1d]]
    %s382 = sld [smem:[#allocation10 + $0x1e]]
    %s383 = sld [smem:[#allocation10 + $0x1f]]
    %s384 = sld [smem:[#allocation10 + $0x20]]
    %s385 = sld [smem:[#allocation10 + $0x21]]
    %s386 = sld [smem:[#allocation10 + $0x22]]
    %s387 = sld [smem:[#allocation10 + $0x23]]
    %s388 = sld [smem:[#allocation10 + $0x24]]
    %s389 = sld [smem:[#allocation10 + $0x25]]
    %s390 = sld [smem:[#allocation10 + $0x26]]
    %s391 = sld [smem:[#allocation10 + $0x27]]
    %s392 = sld [smem:[#allocation10 + $0x28]]
    %s393 = sld [smem:[#allocation10 + $0x29]]
    %s394 = sld [smem:[#allocation10 + $0x2a]]
    %s395 = sld [smem:[#allocation10 + $0x2b]]
    %s396 = sld [smem:[#allocation10 + $0x2c]]
    %s397 = sld [smem:[#allocation10 + $0x2d]]
    %s398 = sld [smem:[#allocation10 + $0x2e]]
    %s399 = sld [smem:[#allocation10 + $0x2f]]
    %s400 = sld [smem:[#allocation10 + $0x30]]
    %s401 = sld [smem:[#allocation10 + $0x31]]
    %s402 = sld [smem:[#allocation10 + $0x32]]
    %s403 = sld [smem:[#allocation10 + $0x33]]
    %s404 = sld [smem:[#allocation10 + $0x34]]
    %s405 = sld [smem:[#allocation10 + $0x35]]
    %s406 = sld [smem:[#allocation10 + $0x36]]
    %s407 = sld [smem:[#allocation10 + $0x37]]
    %s408 = sld [smem:[#allocation10 + $0x38]]
    %s409 = sld [smem:[#allocation10 + $0x39]]
    %s410 = sld [smem:[#allocation10 + $0x3a]]
    %s411 = sld [smem:[#allocation10 + $0x3b]]
    %s412 = sld [smem:[#allocation11]]
    %s413 = sld [smem:[#allocation11 + $0x1]]
    %s414 = sld [smem:[#allocation11 + $0x2]]
    %s415 = sld [smem:[#allocation11 + $0x3]]
    %s416 = sld [smem:[#allocation11 + $0x4]]
    %v417 = vld [vmem:[#allocation3] ss:$3 sm:$0x7]
    %v418 = vstv %s352
    %v419 = vmul.f32 %v418, %v417
    %v420 = vstv %s364
    %v421 = vmul.f32 %v420, %v417
    %v422 = vstv %s376
    %v423 = vmul.f32 %v422, %v417
    %v424 = vstv %s388
    %v425 = vmul.f32 %v424, %v417
    %v426 = vstv %s400
    %v427 = vmul.f32 %v426, %v417
    %s428 = scalar_lea.vmem [#allocation3], 12
    %v429 = vld [vmem:[%s428] ss:$3 sm:$0x7]
    %v430 = vstv %s356
    %v431 = vmul.f32 %v430, %v429
    %v432 = vadd.f32 %v419, %v431
    %v433 = vstv %s368
    %v434 = vmul.f32 %v433, %v429
    %v435 = vadd.f32 %v421, %v434
    %v436 = vstv %s380
    %v437 = vmul.f32 %v436, %v429
    %v438 = vadd.f32 %v423, %v437
    %v439 = vstv %s392
    %v440 = vmul.f32 %v439, %v429
    %v441 = vadd.f32 %v425, %v440
    %v442 = vstv %s404
    %v443 = vmul.f32 %v442, %v429
    %v444 = vadd.f32 %v427, %v443
    %s445 = scalar_lea.vmem [#allocation3], 24
    %v446 = vld [vmem:[%s445] ss:$3 sm:$0x7]
    %v447 = vstv %s360
    %v448 = vmul.f32 %v447, %v446
    %v449 = vadd.f32 %v432, %v448
    %v450 = vstv %s372
    %v451 = vmul.f32 %v450, %v446
    %v452 = vadd.f32 %v435, %v451
    %v453 = vstv %s384
    %v454 = vmul.f32 %v453, %v446
    %v455 = vadd.f32 %v438, %v454
    %v456 = vstv %s396
    %v457 = vmul.f32 %v456, %v446
    %v458 = vadd.f32 %v441, %v457
    %v459 = vstv %s408
    %v460 = vmul.f32 %v459, %v446
    %v461 = vadd.f32 %v444, %v460
    %s462 = scalar_lea.vmem [#allocation3], 1
    %v463 = vld [vmem:[%s462] ss:$3 sm:$0x7]
    %v464 = vstv %s353
    %v465 = vmul.f32 %v464, %v463
    %v466 = vadd.f32 %v449, %v465
    %v467 = vstv %s365
    %v468 = vmul.f32 %v467, %v463
    %v469 = vadd.f32 %v452, %v468
    %v470 = vstv %s377
    %v471 = vmul.f32 %v470, %v463
    %v472 = vadd.f32 %v455, %v471
    %v473 = vstv %s389
    %v474 = vmul.f32 %v473, %v463
    %v475 = vadd.f32 %v458, %v474
    %v476 = vstv %s401
    %v477 = vmul.f32 %v476, %v463
    %v478 = vadd.f32 %v461, %v477
    %s479 = scalar_lea.vmem [#allocation3], 13
    %v480 = vld [vmem:[%s479] ss:$3 sm:$0x7]
    %v481 = vstv %s357
    %v482 = vmul.f32 %v481, %v480
    %v483 = vadd.f32 %v466, %v482
    %v484 = vstv %s369
    %v485 = vmul.f32 %v484, %v480
    %v486 = vadd.f32 %v469, %v485
    %v487 = vstv %s381
    %v488 = vmul.f32 %v487, %v480
    %v489 = vadd.f32 %v472, %v488
    %v490 = vstv %s393
    %v491 = vmul.f32 %v490, %v480
    %v492 = vadd.f32 %v475, %v491
    %v493 = vstv %s405
    %v494 = vmul.f32 %v493, %v480
    %v495 = vadd.f32 %v478, %v494
    %s496 = scalar_lea.vmem [#allocation3], 25
    %v497 = vld [vmem:[%s496] ss:$3 sm:$0x7]
    %v498 = vstv %s361
    %v499 = vmul.f32 %v498, %v497
    %v500 = vadd.f32 %v483, %v499
    %v501 = vstv %s373
    %v502 = vmul.f32 %v501, %v497
    %v503 = vadd.f32 %v486, %v502
    %v504 = vstv %s385
    %v505 = vmul.f32 %v504, %v497
    %v506 = vadd.f32 %v489, %v505
    %v507 = vstv %s397
    %v508 = vmul.f32 %v507, %v497
    %v509 = vadd.f32 %v492, %v508
    %v510 = vstv %s409
    %v511 = vmul.f32 %v510, %v497
    %v512 = vadd.f32 %v495, %v511
    %s513 = scalar_lea.vmem [#allocation3], 2
    %v514 = vld [vmem:[%s513] ss:$3 sm:$0x7]
    %v515 = vstv %s354
    %v516 = vmul.f32 %v515, %v514
    %v517 = vadd.f32 %v500, %v516
    %v518 = vstv %s366
    %v519 = vmul.f32 %v518, %v514
    %v520 = vadd.f32 %v503, %v519
    %v521 = vstv %s378
    %v522 = vmul.f32 %v521, %v514
    %v523 = vadd.f32 %v506, %v522
    %v524 = vstv %s390
    %v525 = vmul.f32 %v524, %v514
    %v526 = vadd.f32 %v509, %v525
    %v527 = vstv %s402
    %v528 = vmul.f32 %v527, %v514
    %v529 = vadd.f32 %v512, %v528
    %s530 = scalar_lea.vmem [#allocation3], 14
    %v531 = vld [vmem:[%s530] ss:$3 sm:$0x7]
    %v532 = vstv %s358
    %v533 = vmul.f32 %v532, %v531
    %v534 = vadd.f32 %v517, %v533
    %v535 = vstv %s370
    %v536 = vmul.f32 %v535, %v531
    %v537 = vadd.f32 %v520, %v536
    %v538 = vstv %s382
    %v539 = vmul.f32 %v538, %v531
    %v540 = vadd.f32 %v523, %v539
    %v541 = vstv %s394
    %v542 = vmul.f32 %v541, %v531
    %v543 = vadd.f32 %v526, %v542
    %v544 = vstv %s406
    %v545 = vmul.f32 %v544, %v531
    %v546 = vadd.f32 %v529, %v545
    %s547 = scalar_lea.vmem [#allocation3], 26
    %v548 = vld [vmem:[%s547] ss:$3 sm:$0x7]
    %v549 = vstv %s362
    %v550 = vmul.f32 %v549, %v548
    %v551 = vadd.f32 %v534, %v550
    %v552 = vstv %s374
    %v553 = vmul.f32 %v552, %v548
    %v554 = vadd.f32 %v537, %v553
    %v555 = vstv %s386
    %v556 = vmul.f32 %v555, %v548
    %v557 = vadd.f32 %v540, %v556
    %v558 = vstv %s398
    %v559 = vmul.f32 %v558, %v548
    %v560 = vadd.f32 %v543, %v559
    %v561 = vstv %s410
    %v562 = vmul.f32 %v561, %v548
    %v563 = vadd.f32 %v546, %v562
    %s564 = scalar_lea.vmem [#allocation3], 3
    %v565 = vld [vmem:[%s564] ss:$3 sm:$0x7]
    %v566 = vstv %s355
    %v567 = vmul.f32 %v566, %v565
    %v568 = vadd.f32 %v551, %v567
    %v569 = vstv %s367
    %v570 = vmul.f32 %v569, %v565
    %v571 = vadd.f32 %v554, %v570
    %v572 = vstv %s379
    %v573 = vmul.f32 %v572, %v565
    %v574 = vadd.f32 %v557, %v573
    %v575 = vstv %s391
    %v576 = vmul.f32 %v575, %v565
    %v577 = vadd.f32 %v560, %v576
    %v578 = vstv %s403
    %v579 = vmul.f32 %v578, %v565
    %v580 = vadd.f32 %v563, %v579
    %s581 = scalar_lea.vmem [#allocation3], 15
    %v582 = vld [vmem:[%s581] ss:$3 sm:$0x7]
    %v583 = vstv %s359
    %v584 = vmul.f32 %v583, %v582
    %v585 = vadd.f32 %v568, %v584
    %v586 = vstv %s371
    %v587 = vmul.f32 %v586, %v582
    %v588 = vadd.f32 %v571, %v587
    %v589 = vstv %s383
    %v590 = vmul.f32 %v589, %v582
    %v591 = vadd.f32 %v574, %v590
    %v592 = vstv %s395
    %v593 = vmul.f32 %v592, %v582
    %v594 = vadd.f32 %v577, %v593
    %v595 = vstv %s407
    %v596 = vmul.f32 %v595, %v582
    %v597 = vadd.f32 %v580, %v596
    %s598 = scalar_lea.vmem [#allocation3], 27
    %v599 = vld [vmem:[%s598] ss:$3 sm:$0x7]
    %v600 = vstv %s363
    %v601 = vmul.f32 %v600, %v599
    %v602 = vadd.f32 %v585, %v601
    %v603 = vstv %s375
    %v604 = vmul.f32 %v603, %v599
    %v605 = vadd.f32 %v588, %v604
    %v606 = vstv %s387
    %v607 = vmul.f32 %v606, %v599
    %v608 = vadd.f32 %v591, %v607
    %v609 = vstv %s399
    %v610 = vmul.f32 %v609, %v599
    %v611 = vadd.f32 %v594, %v610
    %v612 = vstv %s411
    %v613 = vmul.f32 %v612, %v599
    %v614 = vadd.f32 %v597, %v613
    %v615 = vmul.f32 %v418, %v463
    %v616 = vmul.f32 %v420, %v463
    %v617 = vmul.f32 %v422, %v463
    %v618 = vmul.f32 %v424, %v463
    %v619 = vmul.f32 %v426, %v463
    %v620 = vmul.f32 %v430, %v480
    %v621 = vadd.f32 %v615, %v620
    %v622 = vmul.f32 %v433, %v480
    %v623 = vadd.f32 %v616, %v622
    %v624 = vmul.f32 %v436, %v480
    %v625 = vadd.f32 %v617, %v624
    %v626 = vmul.f32 %v439, %v480
    %v627 = vadd.f32 %v618, %v626
    %v628 = vmul.f32 %v442, %v480
    %v629 = vadd.f32 %v619, %v628
    %v630 = vmul.f32 %v447, %v497
    %v631 = vadd.f32 %v621, %v630
    %v632 = vmul.f32 %v450, %v497
    %v633 = vadd.f32 %v623, %v632
    %v634 = vmul.f32 %v453, %v497
    %v635 = vadd.f32 %v625, %v634
    %v636 = vmul.f32 %v456, %v497
    %v637 = vadd.f32 %v627, %v636
    %v638 = vmul.f32 %v459, %v497
    %v639 = vadd.f32 %v629, %v638
    %v640 = vmul.f32 %v464, %v514
    %v641 = vadd.f32 %v631, %v640
    %v642 = vmul.f32 %v467, %v514
    %v643 = vadd.f32 %v633, %v642
    %v644 = vmul.f32 %v470, %v514
    %v645 = vadd.f32 %v635, %v644
    %v646 = vmul.f32 %v473, %v514
    %v647 = vadd.f32 %v637, %v646
    %v648 = vmul.f32 %v476, %v514
    %v649 = vadd.f32 %v639, %v648
    %v650 = vmul.f32 %v481, %v531
    %v651 = vadd.f32 %v641, %v650
    %v652 = vmul.f32 %v484, %v531
    %v653 = vadd.f32 %v643, %v652
    %v654 = vmul.f32 %v487, %v531
    %v655 = vadd.f32 %v645, %v654
    %v656 = vmul.f32 %v490, %v531
    %v657 = vadd.f32 %v647, %v656
    %v658 = vmul.f32 %v493, %v531
    %v659 = vadd.f32 %v649, %v658
    %v660 = vmul.f32 %v498, %v548
    %v661 = vadd.f32 %v651, %v660
    %v662 = vmul.f32 %v501, %v548
    %v663 = vadd.f32 %v653, %v662
    %v664 = vmul.f32 %v504, %v548
    %v665 = vadd.f32 %v655, %v664
    %v666 = vmul.f32 %v507, %v548
    %v667 = vadd.f32 %v657, %v666
    %v668 = vmul.f32 %v510, %v548
    %v669 = vadd.f32 %v659, %v668
    %v670 = vmul.f32 %v515, %v565
    %v671 = vadd.f32 %v661, %v670
    %v672 = vmul.f32 %v518, %v565
    %v673 = vadd.f32 %v663, %v672
    %v674 = vmul.f32 %v521, %v565
    %v675 = vadd.f32 %v665, %v674
    %v676 = vmul.f32 %v524, %v565
    %v677 = vadd.f32 %v667, %v676
    %v678 = vmul.f32 %v527, %v565
    %v679 = vadd.f32 %v669, %v678
    %v680 = vmul.f32 %v532, %v582
    %v681 = vadd.f32 %v671, %v680
    %v682 = vmul.f32 %v535, %v582
    %v683 = vadd.f32 %v673, %v682
    %v684 = vmul.f32 %v538, %v582
    %v685 = vadd.f32 %v675, %v684
    %v686 = vmul.f32 %v541, %v582
    %v687 = vadd.f32 %v677, %v686
    %v688 = vmul.f32 %v544, %v582
    %v689 = vadd.f32 %v679, %v688
    %v690 = vmul.f32 %v549, %v599
    %v691 = vadd.f32 %v681, %v690
    %v692 = vmul.f32 %v552, %v599
    %v693 = vadd.f32 %v683, %v692
    %v694 = vmul.f32 %v555, %v599
    %v695 = vadd.f32 %v685, %v694
    %v696 = vmul.f32 %v558, %v599
    %v697 = vadd.f32 %v687, %v696
    %v698 = vmul.f32 %v561, %v599
    %v699 = vadd.f32 %v689, %v698
    %s700 = scalar_lea.vmem [#allocation3], 4
    %v701 = vld [vmem:[%s700] ss:$3 sm:$0x7]
    %v702 = vmul.f32 %v566, %v701
    %v703 = vadd.f32 %v691, %v702
    %v704 = vmul.f32 %v569, %v701
    %v705 = vadd.f32 %v693, %v704
    %v706 = vmul.f32 %v572, %v701
    %v707 = vadd.f32 %v695, %v706
    %v708 = vmul.f32 %v575, %v701
    %v709 = vadd.f32 %v697, %v708
    %v710 = vmul.f32 %v578, %v701
    %v711 = vadd.f32 %v699, %v710
    %s712 = scalar_lea.vmem [#allocation3], 16
    %v713 = vld [vmem:[%s712] ss:$3 sm:$0x7]
    %v714 = vmul.f32 %v583, %v713
    %v715 = vadd.f32 %v703, %v714
    %v716 = vmul.f32 %v586, %v713
    %v717 = vadd.f32 %v705, %v716
    %v718 = vmul.f32 %v589, %v713
    %v719 = vadd.f32 %v707, %v718
    %v720 = vmul.f32 %v592, %v713
    %v721 = vadd.f32 %v709, %v720
    %v722 = vmul.f32 %v595, %v713
    %v723 = vadd.f32 %v711, %v722
    %s724 = scalar_lea.vmem [#allocation3], 28
    %v725 = vld [vmem:[%s724] ss:$3 sm:$0x7]
    %v726 = vmul.f32 %v600, %v725
    %v727 = vadd.f32 %v715, %v726
    %v728 = vmul.f32 %v603, %v725
    %v729 = vadd.f32 %v717, %v728
    %v730 = vmul.f32 %v606, %v725
    %v731 = vadd.f32 %v719, %v730
    %v732 = vmul.f32 %v609, %v725
    %v733 = vadd.f32 %v721, %v732
    %v734 = vmul.f32 %v612, %v725
    %v735 = vadd.f32 %v723, %v734
    %v736 = vmax.f32 %v602, %v727
    %v737 = vmax.f32 %v605, %v729
    %v738 = vmax.f32 %v608, %v731
    %v739 = vmax.f32 %v611, %v733
    %v740 = vmax.f32 %v614, %v735
    %v741 = vmul.f32 %v418, %v514
    %v742 = vmul.f32 %v420, %v514
    %v743 = vmul.f32 %v422, %v514
    %v744 = vmul.f32 %v424, %v514
    %v745 = vmul.f32 %v426, %v514
    %v746 = vmul.f32 %v430, %v531
    %v747 = vadd.f32 %v741, %v746
    %v748 = vmul.f32 %v433, %v531
    %v749 = vadd.f32 %v742, %v748
    %v750 = vmul.f32 %v436, %v531
    %v751 = vadd.f32 %v743, %v750
    %v752 = vmul.f32 %v439, %v531
    %v753 = vadd.f32 %v744, %v752
    %v754 = vmul.f32 %v442, %v531
    %v755 = vadd.f32 %v745, %v754
    %v756 = vmul.f32 %v447, %v548
    %v757 = vadd.f32 %v747, %v756
    %v758 = vmul.f32 %v450, %v548
    %v759 = vadd.f32 %v749, %v758
    %v760 = vmul.f32 %v453, %v548
    %v761 = vadd.f32 %v751, %v760
    %v762 = vmul.f32 %v456, %v548
    %v763 = vadd.f32 %v753, %v762
    %v764 = vmul.f32 %v459, %v548
    %v765 = vadd.f32 %v755, %v764
    %v766 = vmul.f32 %v464, %v565
    %v767 = vadd.f32 %v757, %v766
    %v768 = vmul.f32 %v467, %v565
    %v769 = vadd.f32 %v759, %v768
    %v770 = vmul.f32 %v470, %v565
    %v771 = vadd.f32 %v761, %v770
    %v772 = vmul.f32 %v473, %v565
    %v773 = vadd.f32 %v763, %v772
    %v774 = vmul.f32 %v476, %v565
    %v775 = vadd.f32 %v765, %v774
    %v776 = vmul.f32 %v481, %v582
    %v777 = vadd.f32 %v767, %v776
    %v778 = vmul.f32 %v484, %v582
    %v779 = vadd.f32 %v769, %v778
    %v780 = vmul.f32 %v487, %v582
    %v781 = vadd.f32 %v771, %v780
    %v782 = vmul.f32 %v490, %v582
    %v783 = vadd.f32 %v773, %v782
    %v784 = vmul.f32 %v493, %v582
    %v785 = vadd.f32 %v775, %v784
    %v786 = vmul.f32 %v498, %v599
    %v787 = vadd.f32 %v777, %v786
    %v788 = vmul.f32 %v501, %v599
    %v789 = vadd.f32 %v779, %v788
    %v790 = vmul.f32 %v504, %v599
    %v791 = vadd.f32 %v781, %v790
    %v792 = vmul.f32 %v507, %v599
    %v793 = vadd.f32 %v783, %v792
    %v794 = vmul.f32 %v510, %v599
    %v795 = vadd.f32 %v785, %v794
    %v796 = vmul.f32 %v515, %v701
    %v797 = vadd.f32 %v787, %v796
    %v798 = vmul.f32 %v518, %v701
    %v799 = vadd.f32 %v789, %v798
    %v800 = vmul.f32 %v521, %v701
    %v801 = vadd.f32 %v791, %v800
    %v802 = vmul.f32 %v524, %v701
    %v803 = vadd.f32 %v793, %v802
    %v804 = vmul.f32 %v527, %v701
    %v805 = vadd.f32 %v795, %v804
    %v806 = vmul.f32 %v532, %v713
    %v807 = vadd.f32 %v797, %v806
    %v808 = vmul.f32 %v535, %v713
    %v809 = vadd.f32 %v799, %v808
    %v810 = vmul.f32 %v538, %v713
    %v811 = vadd.f32 %v801, %v810
    %v812 = vmul.f32 %v541, %v713
    %v813 = vadd.f32 %v803, %v812
    %v814 = vmul.f32 %v544, %v713
    %v815 = vadd.f32 %v805, %v814
    %v816 = vmul.f32 %v549, %v725
    %v817 = vadd.f32 %v807, %v816
    %v818 = vmul.f32 %v552, %v725
    %v819 = vadd.f32 %v809, %v818
    %v820 = vmul.f32 %v555, %v725
    %v821 = vadd.f32 %v811, %v820
    %v822 = vmul.f32 %v558, %v725
    %v823 = vadd.f32 %v813, %v822
    %v824 = vmul.f32 %v561, %v725
    %v825 = vadd.f32 %v815, %v824
    %s826 = scalar_lea.vmem [#allocation3], 5
    %v827 = vld [vmem:[%s826] ss:$3 sm:$0x7]
    %v828 = vmul.f32 %v566, %v827
    %v829 = vadd.f32 %v817, %v828
    %v830 = vmul.f32 %v569, %v827
    %v831 = vadd.f32 %v819, %v830
    %v832 = vmul.f32 %v572, %v827
    %v833 = vadd.f32 %v821, %v832
    %v834 = vmul.f32 %v575, %v827
    %v835 = vadd.f32 %v823, %v834
    %v836 = vmul.f32 %v578, %v827
    %v837 = vadd.f32 %v825, %v836
    %s838 = scalar_lea.vmem [#allocation3], 17
    %v839 = vld [vmem:[%s838] ss:$3 sm:$0x7]
    %v840 = vmul.f32 %v583, %v839
    %v841 = vadd.f32 %v829, %v840
    %v842 = vmul.f32 %v586, %v839
    %v843 = vadd.f32 %v831, %v842
    %v844 = vmul.f32 %v589, %v839
    %v845 = vadd.f32 %v833, %v844
    %v846 = vmul.f32 %v592, %v839
    %v847 = vadd.f32 %v835, %v846
    %v848 = vmul.f32 %v595, %v839
    %v849 = vadd.f32 %v837, %v848
    %s850 = scalar_lea.vmem [#allocation3], 29
    %v851 = vld [vmem:[%s850] ss:$3 sm:$0x7]
    %v852 = vmul.f32 %v600, %v851
    %v853 = vadd.f32 %v841, %v852
    %v854 = vmul.f32 %v603, %v851
    %v855 = vadd.f32 %v843, %v854
    %v856 = vmul.f32 %v606, %v851
    %v857 = vadd.f32 %v845, %v856
    %v858 = vmul.f32 %v609, %v851
    %v859 = vadd.f32 %v847, %v858
    %v860 = vmul.f32 %v612, %v851
    %v861 = vadd.f32 %v849, %v860
    %v862 = vmax.f32 %v736, %v853
    %v863 = vmax.f32 %v737, %v855
    %v864 = vmax.f32 %v738, %v857
    %v865 = vmax.f32 %v739, %v859
    %v866 = vmax.f32 %v740, %v861
    %v867 = vstv %s412
    %v868 = vadd.f32 %v862, %v867
    %v869 = vstv %s413
    %v870 = vadd.f32 %v863, %v869
    %v871 = vstv %s414
    %v872 = vadd.f32 %v864, %v871
    %v873 = vstv %s415
    %v874 = vadd.f32 %v865, %v873
    %v875 = vstv %s416
    %v876 = vadd.f32 %v866, %v875
    %vm877 = vcmask 10240
    %v878 = vsel %vm877, %v868, 0.0
    %v879 = vrot.slane %v878, 4
    %v880 = vadd.f32 %v878, %v879
    %v881 = vrot.slane %v880, 2
    %v882 = vadd.f32 %v880, %v881
    %v883 = vrot.slane %v882, 1
    %v884 = vadd.f32 %v882, %v883
    %v885 = vmul.f32 %v884, 0.33333334
    %v886 = vsel %vm877, %v870, 0.0
    %v887 = vrot.slane %v886, 4
    %v888 = vadd.f32 %v886, %v887
    %v889 = vrot.slane %v888, 2
    %v890 = vadd.f32 %v888, %v889
    %v891 = vrot.slane %v890, 1
    %v892 = vadd.f32 %v890, %v891
    %v893 = vmul.f32 %v892, 0.33333334
    %v894 = vsel %vm877, %v872, 0.0
    %v895 = vrot.slane %v894, 4
    %v896 = vadd.f32 %v894, %v895
    %v897 = vrot.slane %v896, 2
    %v898 = vadd.f32 %v896, %v897
    %v899 = vrot.slane %v898, 1
    %v900 = vadd.f32 %v898, %v899
    %v901 = vmul.f32 %v900, 0.33333334
    %v902 = vsel %vm877, %v874, 0.0
    %v903 = vrot.slane %v902, 4
    %v904 = vadd.f32 %v902, %v903
    %v905 = vrot.slane %v904, 2
    %v906 = vadd.f32 %v904, %v905
    %v907 = vrot.slane %v906, 1
    %v908 = vadd.f32 %v906, %v907
    %v909 = vmul.f32 %v908, 0.33333334
    %v910 = vsel %vm877, %v876, 0.0
    %v911 = vrot.slane %v910, 4
    %v912 = vadd.f32 %v910, %v911
    %v913 = vrot.slane %v912, 2
    %v914 = vadd.f32 %v912, %v913
    %v915 = vrot.slane %v914, 1
    %v916 = vadd.f32 %v914, %v915
    %v917 = vmul.f32 %v916, 0.33333334
    %s918 = sld [smem:[#allocation14]]
    %s919 = sld [smem:[#allocation13]]
    %v920 = vstv %s919
    %v921 = vmul.f32 %v920, %v885
    %v922 = vstv %s918
    %v923 = vadd.f32 %v922, %v921
    %s924 = sld [smem:[#allocation13 + $0x1]]
    %v925 = vstv %s924
    %v926 = vmul.f32 %v925, %v893
    %v927 = vadd.f32 %v923, %v926
    %s928 = sld [smem:[#allocation13 + $0x2]]
    %v929 = vstv %s928
    %v930 = vmul.f32 %v929, %v901
    %v931 = vadd.f32 %v927, %v930
    %s932 = sld [smem:[#allocation13 + $0x3]]
    %v933 = vstv %s932
    %v934 = vmul.f32 %v933, %v909
    %v935 = vadd.f32 %v931, %v934
    %s936 = sld [smem:[#allocation13 + $0x4]]
    %v937 = vstv %s936
    %v938 = vmul.f32 %v937, %v917
    %v939 = vadd.f32 %v935, %v938
    %s940 = sld [smem:[#allocation14 + $0x1]]
    %s941 = sld [smem:[#allocation13 + $0x5]]
    %v942 = vstv %s941
    %v943 = vmul.f32 %v942, %v885
    %v944 = vstv %s940
    %v945 = vadd.f32 %v944, %v943
    %s946 = sld [smem:[#allocation13 + $0x6]]
    %v947 = vstv %s946
    %v948 = vmul.f32 %v947, %v893
    %v949 = vadd.f32 %v945, %v948
    %s950 = sld [smem:[#allocation13 + $0x7]]
    %v951 = vstv %s950
    %v952 = vmul.f32 %v951, %v901
    %v953 = vadd.f32 %v949, %v952
    %s954 = sld [smem:[#allocation13 + $0x8]]
    %v955 = vstv %s954
    %v956 = vmul.f32 %v955, %v909
    %v957 = vadd.f32 %v953, %v956
    %s958 = sld [smem:[#allocation13 + $0x9]]
    %v959 = vstv %s958
    %v960 = vmul.f32 %v959, %v917
    %v961 = vadd.f32 %v957, %v960
    %s962 = sld [smem:[#allocation14 + $0x2]]
    %s963 = sld [smem:[#allocation13 + $0xa]]
    %v964 = vstv %s963
    %v965 = vmul.f32 %v964, %v885
    %v966 = vstv %s962
    %v967 = vadd.f32 %v966, %v965
    %s968 = sld [smem:[#allocation13 + $0xb]]
    %v969 = vstv %s968
    %v970 = vmul.f32 %v969, %v893
    %v971 = vadd.f32 %v967, %v970
    %s972 = sld [smem:[#allocation13 + $0xc]]
    %v973 = vstv %s972
    %v974 = vmul.f32 %v973, %v901
    %v975 = vadd.f32 %v971, %v974
    %s976 = sld [smem:[#allocation13 + $0xd]]
    %v977 = vstv %s976
    %v978 = vmul.f32 %v977, %v909
    %v979 = vadd.f32 %v975, %v978
    %s980 = sld [smem:[#allocation13 + $0xe]]
    %v981 = vstv %s980
    %v982 = vmul.f32 %v981, %v917
    %v983 = vadd.f32 %v979, %v982
    %s984 = sld [smem:[#allocation14 + $0x3]]
    %s985 = sld [smem:[#allocation13 + $0xf]]
    %v986 = vstv %s985
    %v987 = vmul.f32 %v986, %v885
    %v988 = vstv %s984
    %v989 = vadd.f32 %v988, %v987
    %s990 = sld [smem:[#allocation13 + $0x10]]
    %v991 = vstv %s990
    %v992 = vmul.f32 %v991, %v893
    %v993 = vadd.f32 %v989, %v992
    %s994 = sld [smem:[#allocation13 + $0x11]]
    %v995 = vstv %s994
    %v996 = vmul.f32 %v995, %v901
    %v997 = vadd.f32 %v993, %v996
    %s998 = sld [smem:[#allocation13 + $0x12]]
    %v999 = vstv %s998
    %v1000 = vmul.f32 %v999, %v909
    %v1001 = vadd.f32 %v997, %v1000
    %s1002 = sld [smem:[#allocation13 + $0x13]]
    %v1003 = vstv %s1002
    %v1004 = vmul.f32 %v1003, %v917
    %v1005 = vadd.f32 %v1001, %v1004
    %v1006 = vmax.f32 %v939, %v961
    %v1007 = vmax.f32 %v1006, %v983
    %v1008 = vmax.f32 %v1007, %v1005
    %v1009 = vsub.f32 %v939, %v1008
    %v1010 = vmul.f32 %v1009, 1.442695
    %v1011 = vpow.pop %v1010
    %v1012 = vsub.f32 %v961, %v1008
    %v1013 = vmul.f32 %v1012, 1.442695
    %v1014 = vpow.pop %v1013
    %v1015 = vsub.f32 %v983, %v1008
    %v1016 = vmul.f32 %v1015, 1.442695
    %v1017 = vpow.pop %v1016
    %v1018 = vsub.f32 %v1005, %v1008
    %v1019 = vmul.f32 %v1018, 1.442695
    %v1020 = vpow.pop %v1019
    %v1021 = vadd.f32 %v1011, %v1014
    %v1022 = vadd.f32 %v1021, %v1017
    %v1023 = vadd.f32 %v1022, %v1020
    %v1024 = vrcp.pop %v1023
    %v1025 = vmul.f32 1.0, %v1024
    %v1026 = vmul.f32 %v1011, %v1025
    %v1027 = vmul.f32 %v1014, %v1025
    %v1028 = vmul.f32 %v1017, %v1025
    %v1029 = vmul.f32 %v1020, %v1025
    %vm1030 = vcmask 1040384
    %v1031 = vsel %vm1030, %v1026, %v1027
    %vm1032 = vcmask 1041408
    %v1033 = vsel %vm1032, %v1031, %v1028
    %vm1034 = vcmask 1042432
    %v1035 = vsel %vm1034, %v1033, %v1029
    %1036 = vst.msk [vmem:[%s7] sm:$0xf] %vm340, %v1035
    // Predicated region
    $region58: #{tpu_custom_call.1} parent=1 // pred_check
      _
    $region59: #{tpu_custom_call.1} parent=1 // pred_check_branch
      %1038 = sbr.rel (0) target = $region61
    $region60: #{tpu_custom_call.1} parent=1 // pred_region
      _
    $region61: #{tpu_custom_call.1} parent=1 // pred_fallthru
      _
    // Predicated region
    $region62: #{tpu_custom_call.1} parent=1 // pred_check
      _
    $region63: #{tpu_custom_call.1} parent=1 // pred_check_branch
      %1040 = sbr.rel (0) target = $region65
    $region64: #{tpu_custom_call.1} parent=1 // pred_region
      _
    $region65: #{tpu_custom_call.1} parent=1 // pred_fallthru
      _
    %1041 = vsyncpa [#allocation5], 1
    %1042 = vsyncpa [#allocation6], 1
    %1043 = vsyncpa [#allocation9], 1
    %1044 = vsyncpa [#allocation12], 1
    %1045 = vsyncpa [#allocation15], 1

</llo_original>
